<compile_context>
chip_gen: v7x
topology: tpu7x:2x2x1
jax: 0.10.0
libtpu: 0.0.40
codegen_flags: <defaults>
</compile_context>

<pallas_src>
import jax
import jax.numpy as jnp
from jax.experimental import pallas as pl
from jax.experimental.pallas import tpu as pltpu

IN_CH = 8     # in_channels
OUT_CH = 16   # out_channels
HID = 64      # hidden width of pos_nn / attn_nn MLPs (fixed by module)
N = 16        # number of nodes
E = 40        # number of edges

# ---------------------------------------------------------------------------
# Weight-slab row layout.  Every block starts on an 8-row (sublane) boundary;
# lane dim is HID (=64) and every slice starts at lane 0, so all in-kernel
# slices are relayout-free.  Zero rows double as K-padding for lane-padded
# activations (x padded 8->16 lanes, pos padded 3->16 lanes).
# ---------------------------------------------------------------------------
W_ROWS = 264
R_W_IN, R_B_IN = 0, 16          # w_in in rows 0:8 of a 16-row block (rows 8:16 zero)
R_W_LIN, R_W_SRC, R_W_DST = 24, 32, 40
R_WP1, R_BP1 = 48, 64           # wp1 in rows 48:51 of a 16-row block (rows 51:64 zero)
R_WP2, R_BP2 = 72, 136
R_WA1, R_BA1 = 144, 160
R_WA2, R_BA2 = 168, 232
R_W_OUT, R_B_OUT = 240, 256


# ---------------------------------------------------------------------------
# Fused kernel: node projections + pairwise messages + masked softmax +
#               aggregation + lin_out + relu.  Single invocation, all in VMEM.
# ---------------------------------------------------------------------------
def fused_kernel(dyn_ref, w_ref, o_ref):
    n, c = o_ref.shape
    f32 = jnp.float32

    # ---- dynamic slab (one DMA): x | pos | additive softmax mask -----------
    xp = dyn_ref[0:n, :]                        # (n, c): x zero-padded to c lanes
    posp = dyn_ref[n:2 * n, :]                  # (n, c): pos zero-padded to c lanes
    bias = dyn_ref[2 * n:2 * n + n * n, :]      # (n*n, c): 0 on edges/self, -1e30 else

    # ---- weight slab (one DMA): static 8-aligned sublane slices -------------
    w_in = w_ref[R_W_IN:R_W_IN + c, 0:IN_CH]    # (16, 8), rows 8:16 zero (K-pad)
    b_in = w_ref[R_B_IN:R_B_IN + 1, 0:IN_CH]
    w_lin = w_ref[R_W_LIN:R_W_LIN + IN_CH, 0:c]
    w_src = w_ref[R_W_SRC:R_W_SRC + IN_CH, 0:c]
    w_dst = w_ref[R_W_DST:R_W_DST + IN_CH, 0:c]
    wp1 = w_ref[R_WP1:R_WP1 + c, 0:HID]         # (16, 64), rows 3:16 zero (K-pad)
    bp1 = w_ref[R_BP1:R_BP1 + 1, 0:HID]
    wp2 = w_ref[R_WP2:R_WP2 + HID, 0:c]
    bp2 = w_ref[R_BP2:R_BP2 + 1, 0:c]
    wa1 = w_ref[R_WA1:R_WA1 + c, 0:HID]
    ba1 = w_ref[R_BA1:R_BA1 + 1, 0:HID]
    wa2 = w_ref[R_WA2:R_WA2 + HID, 0:c]
    ba2 = w_ref[R_BA2:R_BA2 + 1, 0:c]
    w_out = w_ref[R_W_OUT:R_W_OUT + c, 0:c]
    b_out = w_ref[R_B_OUT:R_B_OUT + 1, 0:c]

    # ---- per-node projections (zero-padded lanes x zero weight rows = exact) --
    x1 = jnp.maximum(
        jnp.dot(xp, w_in, preferred_element_type=f32) + b_in, 0.0)      # (n, 8)
    h = jnp.dot(x1, w_lin, preferred_element_type=f32)                  # (n, c)
    a_src = jnp.dot(x1, w_src, preferred_element_type=f32)              # (n, c)
    a_dst = jnp.dot(x1, w_dst, preferred_element_type=f32)              # (n, c)

    # pos_nn first layer is linear in (pos_i - pos_j): compute pos @ Wp1 once
    # per node on the MXU, difference per pair.
    p64 = jnp.dot(posp, wp1, preferred_element_type=f32)                # (n, HID)

    # ---- pairwise messages (all n*n pairs, M = 256 MXU rows) ----------------
    dpre = p64[:, None, :] - p64[None, :, :] + bp1                      # (n, n, HID)
    d1 = jnp.maximum(dpre, 0.0).reshape(n * n, HID)
    delta = jnp.maximum(
        jnp.dot(d1, wp2, preferred_element_type=f32) + bp2, 0.0)        # (n*n, c)

    a = (a_dst[:, None, :] - a_src[None, :, :]).reshape(n * n, c)
    g = a + delta
    g = jnp.maximum(jnp.dot(g, wa1, preferred_element_type=f32) + ba1, 0.0)
    g = jnp.maximum(jnp.dot(g, wa2, preferred_element_type=f32) + ba2, 0.0)  # (n*n, c)

    # ---- masked per-target, per-channel softmax over source nodes ----------
    # additive bias (0 on edges / self-loops, -1e30 elsewhere) already in g's
    # (n*n, c) layout: pure VALU add, no relayout.  Self loops are forced, so
    # every row has a finite max and the denominator is >= 1.
    gm = (g + bias).reshape(n, n, c)                                    # (n, n, c)
    mx = jnp.max(gm, axis=1, keepdims=True)                             # (n, 1, c)
    e = jnp.exp(gm - mx)                                                # masked -> 0
    s = jnp.sum(e, axis=1, keepdims=True)
    alpha = e / s                                                       # exact divide

    # ---- aggregate (aggr='add'), then lin_out + relu ------------------------
    msg = h[None, :, :] + delta.reshape(n, n, c)
    agg = jnp.sum(alpha * msg, axis=1)                                  # (n, c)
    o_ref[...] = jnp.maximum(
        jnp.dot(agg, w_out, preferred_element_type=f32) + b_out, 0.0)


# ---------------------------------------------------------------------------
# Wrapper
# ---------------------------------------------------------------------------
def pack_params(p):
    """Pack all weight/bias tensors into one zero-padded (264, 64) f32 slab."""
    w = jnp.zeros((W_ROWS, HID), jnp.float32)
    w = w.at[R_W_IN:R_W_IN + IN_CH, 0:IN_CH].set(p["w_in"])
    w = w.at[R_B_IN:R_B_IN + 1, 0:IN_CH].set(p["b_in"])
    w = w.at[R_W_LIN:R_W_LIN + IN_CH, 0:OUT_CH].set(p["w_lin"])
    w = w.at[R_W_SRC:R_W_SRC + IN_CH, 0:OUT_CH].set(p["w_src"])
    w = w.at[R_W_DST:R_W_DST + IN_CH, 0:OUT_CH].set(p["w_dst"])
    w = w.at[R_WP1:R_WP1 + 3, 0:HID].set(p["wp1"])
    w = w.at[R_BP1:R_BP1 + 1, 0:HID].set(p["bp1"])
    w = w.at[R_WP2:R_WP2 + HID, 0:OUT_CH].set(p["wp2"])
    w = w.at[R_BP2:R_BP2 + 1, 0:OUT_CH].set(p["bp2"])
    w = w.at[R_WA1:R_WA1 + OUT_CH, 0:HID].set(p["wa1"])
    w = w.at[R_BA1:R_BA1 + 1, 0:HID].set(p["ba1"])
    w = w.at[R_WA2:R_WA2 + HID, 0:OUT_CH].set(p["wa2"])
    w = w.at[R_BA2:R_BA2 + 1, 0:OUT_CH].set(p["ba2"])
    w = w.at[R_W_OUT:R_W_OUT + OUT_CH, 0:OUT_CH].set(p["w_out"])
    w = w.at[R_B_OUT:R_B_OUT + 1, 0:OUT_CH].set(p["b_out"])
    return w


@jax.jit
def transformer_block(x, pos, edge_index, w_slab):
    n, in_ch = x.shape
    c = OUT_CH

    # Dense adjacency mask[dst, src] with forced self loops -> additive bias,
    # pre-broadcast over channels here (wrapper) so the kernel does a plain add.
    src, dst = edge_index[0], edge_index[1]
    mask = jnp.zeros((n, n), jnp.float32).at[dst, src].set(1.0)
    mask = jnp.where(jnp.eye(n, dtype=bool), 1.0, mask)
    bias = jnp.where(mask > 0, 0.0, -1e30).astype(jnp.float32)
    bias2d = jnp.broadcast_to(bias.reshape(n * n, 1), (n * n, c))

    # Dynamic slab: x (lane-padded to c), pos (lane-padded to c), softmax bias.
    dyn = jnp.zeros((2 * n + n * n, c), jnp.float32)
    dyn = dyn.at[0:n, 0:in_ch].set(x)
    dyn = dyn.at[n:2 * n, 0:3].set(pos)
    dyn = dyn.at[2 * n:, :].set(bias2d)

    vmem = pl.BlockSpec(memory_space=pltpu.MemorySpace.VMEM)
    return pl.pallas_call(
        fused_kernel,
        in_specs=[vmem, vmem],
        out_specs=vmem,
        out_shape=jax.ShapeDtypeStruct((n, c), jnp.float32),
    )(dyn, w_slab)


# ---------------------------------------------------------------------------
# Pure-JAX reference (dense formulation, same semantics)
# ---------------------------------------------------------------------------
def reference(x, pos, edge_index, p):
    n = x.shape[0]
    src, dst = edge_index[0], edge_index[1]
    mask = jnp.zeros((n, n), jnp.float32).at[dst, src].set(1.0)
    mask = jnp.where(jnp.eye(n, dtype=bool), 1.0, mask)

    x1 = jax.nn.relu(x @ p["w_in"] + p["b_in"])
    h = x1 @ p["w_lin"]
    a_s = x1 @ p["w_src"]
    a_d = x1 @ p["w_dst"]
    d = pos[:, None, :] - pos[None, :, :]
    delta = jax.nn.relu(d @ p["wp1"] + p["bp1"])
    delta = jax.nn.relu(delta @ p["wp2"] + p["bp2"])
    g = a_d[:, None, :] - a_s[None, :, :] + delta
    g = jax.nn.relu(g @ p["wa1"] + p["ba1"])
    g = jax.nn.relu(g @ p["wa2"] + p["ba2"])
    m = mask[:, :, None]
    gm = jnp.where(m > 0, g, -1e30)
    e = jnp.where(m > 0, jnp.exp(g - gm.max(1, keepdims=True)), 0.0)
    alpha = e / (e.sum(1, keepdims=True) + 1e-16)
    out = (alpha * (h[None, :, :] + delta)).sum(1)
    return jax.nn.relu(out @ p["w_out"] + p["b_out"])


def init_params(key):
    ks = jax.random.split(key, 16)

    def u(k, shape, fan_in):
        b = 1.0 / jnp.sqrt(jnp.float32(fan_in))
        return jax.random.uniform(k, shape, jnp.float32, -b, b)

    return {
        "w_in":  u(ks[0], (IN_CH, IN_CH), IN_CH),
        "b_in":  u(ks[1], (1, IN_CH), IN_CH),
        "w_lin": u(ks[2], (IN_CH, OUT_CH), IN_CH),     # bias=False in PyG conv
        "w_src": u(ks[3], (IN_CH, OUT_CH), IN_CH),
        "w_dst": u(ks[4], (IN_CH, OUT_CH), IN_CH),
        "wp1":   u(ks[5], (3, HID), 3),
        "bp1":   u(ks[6], (1, HID), 3),
        "wp2":   u(ks[7], (HID, OUT_CH), HID),
        "bp2":   u(ks[8], (1, OUT_CH), HID),
        "wa1":   u(ks[9], (OUT_CH, HID), OUT_CH),
        "ba1":   u(ks[10], (1, HID), OUT_CH),
        "wa2":   u(ks[11], (HID, OUT_CH), HID),
        "ba2":   u(ks[12], (1, OUT_CH), HID),
        "w_out": u(ks[13], (OUT_CH, OUT_CH), OUT_CH),
        "b_out": u(ks[14], (1, OUT_CH), OUT_CH),
    }


if __name__ == "__main__":
    key = jax.random.PRNGKey(0)
    k_p, k_x, k_pos, k_s, k_d = jax.random.split(key, 5)

    params = init_params(k_p)
    x = jax.random.normal(k_x, (N, IN_CH), jnp.float32)
    pos = jax.random.normal(k_pos, (N, 3), jnp.float32)
    edge_index = jnp.stack([jax.random.randint(k_s, (E,), 0, N),
                            jax.random.randint(k_d, (E,), 0, N)]).astype(jnp.int32)

    w_slab = pack_params(params)   # packed once; reused across calls
    out = transformer_block(x, pos, edge_index, w_slab)
    out = jax.block_until_ready(out)

    ref = reference(x, pos, edge_index, params)
    assert out.shape == (N, OUT_CH)
    # Softmax divide is exact now; tolerance covers MXU-vs-XLA f32 matmul rounding.
    assert jnp.allclose(out, ref, atol=2e-3, rtol=2e-3), "mismatch vs reference"

    print("KERNEL_OK")
</pallas_src>

<mosaic_0001>
module attributes {stable_mosaic.version = 11 : i64} {
  func.func @fused_kernel(%arg0: memref<288x16xf32, #tpu.memory_space<vmem>>, %arg1: memref<264x64xf32, #tpu.memory_space<vmem>>, %arg2: memref<16x16xf32, #tpu.memory_space<vmem>>) attributes {dimension_semantics = [], scalar_prefetch = 0 : i64, scratch_operands = 0 : i64, tpu.core_type = #tpu.core_type<tc>} {
    %c0 = arith.constant 0 : index
    %c0_0 = arith.constant 0 : index
    %0 = vector.load %arg0[%c0, %c0_0] : memref<288x16xf32, #tpu.memory_space<vmem>>, vector<16x16xf32>
    %c16 = arith.constant 16 : index
    %c0_1 = arith.constant 0 : index
    %1 = vector.load %arg0[%c16, %c0_1] : memref<288x16xf32, #tpu.memory_space<vmem>>, vector<16x16xf32>
    %c32 = arith.constant 32 : index
    %c0_2 = arith.constant 0 : index
    %2 = vector.load %arg0[%c32, %c0_2] : memref<288x16xf32, #tpu.memory_space<vmem>>, vector<256x16xf32>
    %c0_3 = arith.constant 0 : index
    %c0_4 = arith.constant 0 : index
    %3 = vector.load %arg1[%c0_3, %c0_4] : memref<264x64xf32, #tpu.memory_space<vmem>>, vector<16x8xf32>
    %c16_5 = arith.constant 16 : index
    %c0_6 = arith.constant 0 : index
    %4 = vector.load %arg1[%c16_5, %c0_6] : memref<264x64xf32, #tpu.memory_space<vmem>>, vector<1x8xf32>
    %c24 = arith.constant 24 : index
    %c0_7 = arith.constant 0 : index
    %5 = vector.load %arg1[%c24, %c0_7] : memref<264x64xf32, #tpu.memory_space<vmem>>, vector<8x16xf32>
    %c32_8 = arith.constant 32 : index
    %c0_9 = arith.constant 0 : index
    %6 = vector.load %arg1[%c32_8, %c0_9] : memref<264x64xf32, #tpu.memory_space<vmem>>, vector<8x16xf32>
    %c40 = arith.constant 40 : index
    %c0_10 = arith.constant 0 : index
    %7 = vector.load %arg1[%c40, %c0_10] : memref<264x64xf32, #tpu.memory_space<vmem>>, vector<8x16xf32>
    %c48 = arith.constant 48 : index
    %c0_11 = arith.constant 0 : index
    %8 = vector.load %arg1[%c48, %c0_11] : memref<264x64xf32, #tpu.memory_space<vmem>>, vector<16x64xf32>
    %c64 = arith.constant 64 : index
    %c0_12 = arith.constant 0 : index
    %9 = vector.load %arg1[%c64, %c0_12] : memref<264x64xf32, #tpu.memory_space<vmem>>, vector<1x64xf32>
    %c72 = arith.constant 72 : index
    %c0_13 = arith.constant 0 : index
    %10 = vector.load %arg1[%c72, %c0_13] : memref<264x64xf32, #tpu.memory_space<vmem>>, vector<64x16xf32>
    %c136 = arith.constant 136 : index
    %c0_14 = arith.constant 0 : index
    %11 = vector.load %arg1[%c136, %c0_14] : memref<264x64xf32, #tpu.memory_space<vmem>>, vector<1x16xf32>
    %c144 = arith.constant 144 : index
    %c0_15 = arith.constant 0 : index
    %12 = vector.load %arg1[%c144, %c0_15] : memref<264x64xf32, #tpu.memory_space<vmem>>, vector<16x64xf32>
    %c160 = arith.constant 160 : index
    %c0_16 = arith.constant 0 : index
    %13 = vector.load %arg1[%c160, %c0_16] : memref<264x64xf32, #tpu.memory_space<vmem>>, vector<1x64xf32>
    %c168 = arith.constant 168 : index
    %c0_17 = arith.constant 0 : index
    %14 = vector.load %arg1[%c168, %c0_17] : memref<264x64xf32, #tpu.memory_space<vmem>>, vector<64x16xf32>
    %c232 = arith.constant 232 : index
    %c0_18 = arith.constant 0 : index
    %15 = vector.load %arg1[%c232, %c0_18] : memref<264x64xf32, #tpu.memory_space<vmem>>, vector<1x16xf32>
    %c240 = arith.constant 240 : index
    %c0_19 = arith.constant 0 : index
    %16 = vector.load %arg1[%c240, %c0_19] : memref<264x64xf32, #tpu.memory_space<vmem>>, vector<16x16xf32>
    %c256 = arith.constant 256 : index
    %c0_20 = arith.constant 0 : index
    %17 = vector.load %arg1[%c256, %c0_20] : memref<264x64xf32, #tpu.memory_space<vmem>>, vector<1x16xf32>
    %cst = arith.constant dense<0.000000e+00> : vector<16x8xf32>
    %18 = tpu.matmul %0, %3, %cst {dimension_numbers = #tpu.dot_dimension_numbers<[1], [0], [0], [1], [0, 0, 1, 1], [], []>} : vector<16x16xf32>, vector<16x8xf32>, vector<16x8xf32> -> vector<16x8xf32>
    %19 = vector.broadcast %4 : vector<1x8xf32> to vector<16x8xf32>
    %20 = arith.addf %18, %19 : vector<16x8xf32>
    %cst_21 = arith.constant 0.000000e+00 : f32
    %21 = vector.broadcast %cst_21 : f32 to vector<16x8xf32>
    %22 = arith.maximumf %20, %21 : vector<16x8xf32>
    %cst_22 = arith.constant dense<0.000000e+00> : vector<16x16xf32>
    %23 = tpu.matmul %22, %5, %cst_22 {dimension_numbers = #tpu.dot_dimension_numbers<[1], [0], [0], [1], [0, 0, 1, 1], [], []>} : vector<16x8xf32>, vector<8x16xf32>, vector<16x16xf32> -> vector<16x16xf32>
    %cst_23 = arith.constant dense<0.000000e+00> : vector<16x16xf32>
    %24 = tpu.matmul %22, %6, %cst_23 {dimension_numbers = #tpu.dot_dimension_numbers<[1], [0], [0], [1], [0, 0, 1, 1], [], []>} : vector<16x8xf32>, vector<8x16xf32>, vector<16x16xf32> -> vector<16x16xf32>
    %cst_24 = arith.constant dense<0.000000e+00> : vector<16x16xf32>
    %25 = tpu.matmul %22, %7, %cst_24 {dimension_numbers = #tpu.dot_dimension_numbers<[1], [0], [0], [1], [0, 0, 1, 1], [], []>} : vector<16x8xf32>, vector<8x16xf32>, vector<16x16xf32> -> vector<16x16xf32>
    %cst_25 = arith.constant dense<0.000000e+00> : vector<16x64xf32>
    %26 = tpu.matmul %1, %8, %cst_25 {dimension_numbers = #tpu.dot_dimension_numbers<[1], [0], [0], [1], [0, 0, 1, 1], [], []>} : vector<16x16xf32>, vector<16x64xf32>, vector<16x64xf32> -> vector<16x64xf32>
    %27 = vector.shape_cast %26 : vector<16x64xf32> to vector<16x1x64xf32>
    %28 = vector.shape_cast %26 : vector<16x64xf32> to vector<1x16x64xf32>
    %29 = vector.broadcast %27 : vector<16x1x64xf32> to vector<16x16x64xf32>
    %30 = vector.broadcast %28 : vector<1x16x64xf32> to vector<16x16x64xf32>
    %31 = arith.subf %29, %30 : vector<16x16x64xf32>
    %32 = vector.shape_cast %9 : vector<1x64xf32> to vector<1x1x64xf32>
    %33 = vector.broadcast %32 : vector<1x1x64xf32> to vector<16x16x64xf32>
    %34 = arith.addf %31, %33 : vector<16x16x64xf32>
    %cst_26 = arith.constant 0.000000e+00 : f32
    %35 = vector.broadcast %cst_26 : f32 to vector<16x16x64xf32>
    %36 = arith.maximumf %34, %35 : vector<16x16x64xf32>
    %37 = vector.shape_cast %36 : vector<16x16x64xf32> to vector<256x64xf32>
    %cst_27 = arith.constant dense<0.000000e+00> : vector<256x16xf32>
    %38 = tpu.matmul %37, %10, %cst_27 {dimension_numbers = #tpu.dot_dimension_numbers<[1], [0], [0], [1], [0, 0, 1, 1], [], []>} : vector<256x64xf32>, vector<64x16xf32>, vector<256x16xf32> -> vector<256x16xf32>
    %39 = vector.broadcast %11 : vector<1x16xf32> to vector<256x16xf32>
    %40 = arith.addf %38, %39 : vector<256x16xf32>
    %cst_28 = arith.constant 0.000000e+00 : f32
    %41 = vector.broadcast %cst_28 : f32 to vector<256x16xf32>
    %42 = arith.maximumf %40, %41 : vector<256x16xf32>
    %43 = vector.shape_cast %25 : vector<16x16xf32> to vector<16x1x16xf32>
    %44 = vector.shape_cast %24 : vector<16x16xf32> to vector<1x16x16xf32>
    %45 = vector.broadcast %43 : vector<16x1x16xf32> to vector<16x16x16xf32>
    %46 = vector.broadcast %44 : vector<1x16x16xf32> to vector<16x16x16xf32>
    %47 = arith.subf %45, %46 : vector<16x16x16xf32>
    %48 = vector.shape_cast %47 : vector<16x16x16xf32> to vector<256x16xf32>
    %49 = arith.addf %48, %42 : vector<256x16xf32>
    %cst_29 = arith.constant dense<0.000000e+00> : vector<256x64xf32>
    %50 = tpu.matmul %49, %12, %cst_29 {dimension_numbers = #tpu.dot_dimension_numbers<[1], [0], [0], [1], [0, 0, 1, 1], [], []>} : vector<256x16xf32>, vector<16x64xf32>, vector<256x64xf32> -> vector<256x64xf32>
    %51 = vector.broadcast %13 : vector<1x64xf32> to vector<256x64xf32>
    %52 = arith.addf %50, %51 : vector<256x64xf32>
    %cst_30 = arith.constant 0.000000e+00 : f32
    %53 = vector.broadcast %cst_30 : f32 to vector<256x64xf32>
    %54 = arith.maximumf %52, %53 : vector<256x64xf32>
    %cst_31 = arith.constant dense<0.000000e+00> : vector<256x16xf32>
    %55 = tpu.matmul %54, %14, %cst_31 {dimension_numbers = #tpu.dot_dimension_numbers<[1], [0], [0], [1], [0, 0, 1, 1], [], []>} : vector<256x64xf32>, vector<64x16xf32>, vector<256x16xf32> -> vector<256x16xf32>
    %56 = vector.broadcast %15 : vector<1x16xf32> to vector<256x16xf32>
    %57 = arith.addf %55, %56 : vector<256x16xf32>
    %cst_32 = arith.constant 0.000000e+00 : f32
    %58 = vector.broadcast %cst_32 : f32 to vector<256x16xf32>
    %59 = arith.maximumf %57, %58 : vector<256x16xf32>
    %60 = arith.addf %59, %2 : vector<256x16xf32>
    %61 = vector.shape_cast %60 : vector<256x16xf32> to vector<16x16x16xf32>
    %cst_33 = arith.constant dense<0xFF800000> : vector<16x16xf32>
    %62 = vector.multi_reduction <maximumf>, %61, %cst_33 [1] : vector<16x16x16xf32> to vector<16x16xf32>
    %63 = vector.shape_cast %62 : vector<16x16xf32> to vector<16x1x16xf32>
    %64 = vector.broadcast %63 : vector<16x1x16xf32> to vector<16x16x16xf32>
    %65 = arith.subf %61, %64 : vector<16x16x16xf32>
    %66 = math.exp %65 : vector<16x16x16xf32>
    %cst_34 = arith.constant dense<0.000000e+00> : vector<16x16xf32>
    %67 = vector.multi_reduction <add>, %66, %cst_34 [1] : vector<16x16x16xf32> to vector<16x16xf32>
    %68 = vector.shape_cast %67 : vector<16x16xf32> to vector<16x1x16xf32>
    %69 = vector.broadcast %68 : vector<16x1x16xf32> to vector<16x16x16xf32>
    %70 = arith.divf %66, %69 : vector<16x16x16xf32>
    %71 = vector.shape_cast %23 : vector<16x16xf32> to vector<1x16x16xf32>
    %72 = vector.shape_cast %42 : vector<256x16xf32> to vector<16x16x16xf32>
    %73 = vector.broadcast %71 : vector<1x16x16xf32> to vector<16x16x16xf32>
    %74 = arith.addf %73, %72 : vector<16x16x16xf32>
    %75 = arith.mulf %70, %74 : vector<16x16x16xf32>
    %cst_35 = arith.constant dense<0.000000e+00> : vector<16x16xf32>
    %76 = vector.multi_reduction <add>, %75, %cst_35 [1] : vector<16x16x16xf32> to vector<16x16xf32>
    %cst_36 = arith.constant dense<0.000000e+00> : vector<16x16xf32>
    %77 = tpu.matmul %76, %16, %cst_36 {dimension_numbers = #tpu.dot_dimension_numbers<[1], [0], [0], [1], [0, 0, 1, 1], [], []>} : vector<16x16xf32>, vector<16x16xf32>, vector<16x16xf32> -> vector<16x16xf32>
    %78 = vector.broadcast %17 : vector<1x16xf32> to vector<16x16xf32>
    %79 = arith.addf %77, %78 : vector<16x16xf32>
    %cst_37 = arith.constant 0.000000e+00 : f32
    %80 = vector.broadcast %cst_37 : f32 to vector<16x16xf32>
    %81 = arith.maximumf %79, %80 : vector<16x16xf32>
    %c0_38 = arith.constant 0 : index
    %c0_39 = arith.constant 0 : index
    %82 = vector.load %arg2[%c0_38, %c0_39] : memref<16x16xf32, #tpu.memory_space<vmem>>, vector<16x16xf32>
    tpu.vector_store %arg2[%c0_38, %c0_39], %81 {strides = array<i32>} : memref<16x16xf32, #tpu.memory_space<vmem>>, vector<16x16xf32>,
    return
  }
}

</mosaic_0001>

<llo_original>
// kernel: transformer_block.1
$region0: #{transformer_block.1}
  #allocation0 [shape = 'u32[]', space=smem, size = 0x4, offset = 0x4, fixed_abs, tag = 'smem constant byte address 0x4 - core index']
  #allocation1 [shape = 'u32[144,128]{1,0:T(1,128)}', space=vmem, size = 0x12000, scoped, tag = 'internal scratch']
  %s0 = inlined_call_operand.vmem [shape: f32[288,16], index: 0, kind: input, shape index: {}]
  %s1 = inlined_call_operand.vmem [shape: f32[264,64], index: 1, kind: input, shape index: {}]
  %s2 = inlined_call_operand.hbm [shape: f32[16,16], index: 2, kind: output, shape index: {}]
  %s3 = sld [smem:[#allocation0]]
  $region18: #{transformer_block.1} parent=0
    _
  %s5 = ssub.s32 1, %s3
  %s6 = scalar_select 0, %s5, %s3
  $region1: #{transformer_block.1} parent=0
    #allocation2 [shape = 'u8[8192]{0}', space=vmem, size = 0x2000, scoped, tag = 'output window, operand 0, single buffered']
    #allocation3 [shape = 's32[1]{0}', space=sflag, size = 0x4, scoped, tag = 'scoped memory for transformer_block.1']
    %7 = vsyncpa [#allocation3], 0
    // Predicated region
    $region2: #{transformer_block.1} parent=1 // pred_check
      _
    $region3: #{transformer_block.1} parent=1 // pred_check_branch
      %9 = sbr.rel (0) target = $region5
    $region4: #{transformer_block.1} parent=1 // pred_region
      _
    $region5: #{transformer_block.1} parent=1 // pred_fallthru
      _
    // Predicated region
    $region6: #{transformer_block.1} parent=1 // pred_check
      _
    $region7: #{transformer_block.1} parent=1 // pred_check_branch
      %11 = sbr.rel (0) target = $region9
    $region8: #{transformer_block.1} parent=1 // pred_region
      _
    $region9: #{transformer_block.1} parent=1 // pred_fallthru
      _
    %v12 = vld [vmem:[%s0] sm:$0xff]
    %v13 = vld [vmem:[%s0 + $0x8] sm:$0xff]
    %v14 = vld [vmem:[%s0 + $0x10] sm:$0xff]
    %v15 = vld [vmem:[%s0 + $0x18] sm:$0xff]
    %v16 = vld [vmem:[%s0 + $0x20] sm:$0xff]
    %v17 = vld [vmem:[%s0 + $0x28] sm:$0xff]
    %v18 = vld [vmem:[%s0 + $0x30] sm:$0xff]
    %v19 = vld [vmem:[%s0 + $0x38] sm:$0xff]
    %v20 = vld [vmem:[%s0 + $0x40] sm:$0xff]
    %v21 = vld [vmem:[%s0 + $0x48] sm:$0xff]
    %v22 = vld [vmem:[%s0 + $0x50] sm:$0xff]
    %v23 = vld [vmem:[%s0 + $0x58] sm:$0xff]
    %v24 = vld [vmem:[%s0 + $0x60] sm:$0xff]
    %v25 = vld [vmem:[%s0 + $0x68] sm:$0xff]
    %v26 = vld [vmem:[%s0 + $0x70] sm:$0xff]
    %v27 = vld [vmem:[%s0 + $0x78] sm:$0xff]
    %v28 = vld [vmem:[%s0 + $0x80] sm:$0xff]
    %v29 = vld [vmem:[%s0 + $0x88] sm:$0xff]
    %v30 = vld [vmem:[%s0 + $0x90] sm:$0xff]
    %v31 = vld [vmem:[%s0 + $0x98] sm:$0xff]
    %v32 = vld [vmem:[%s0 + $0xa0] sm:$0xff]
    %v33 = vld [vmem:[%s0 + $0xa8] sm:$0xff]
    %v34 = vld [vmem:[%s0 + $0xb0] sm:$0xff]
    %v35 = vld [vmem:[%s0 + $0xb8] sm:$0xff]
    %v36 = vld [vmem:[%s0 + $0xc0] sm:$0xff]
    %v37 = vld [vmem:[%s0 + $0xc8] sm:$0xff]
    %v38 = vld [vmem:[%s0 + $0xd0] sm:$0xff]
    %v39 = vld [vmem:[%s0 + $0xd8] sm:$0xff]
    %v40 = vld [vmem:[%s0 + $0xe0] sm:$0xff]
    %v41 = vld [vmem:[%s0 + $0xe8] sm:$0xff]
    %v42 = vld [vmem:[%s0 + $0xf0] sm:$0xff]
    %v43 = vld [vmem:[%s0 + $0xf8] sm:$0xff]
    %v44 = vld [vmem:[%s0 + $0x100] sm:$0xff]
    %v45 = vld [vmem:[%s0 + $0x108] sm:$0xff]
    %v46 = vld [vmem:[%s0 + $0x110] sm:$0xff]
    %v47 = vld [vmem:[%s0 + $0x118] sm:$0xff]
    %v48 = vld [vmem:[%s1] sm:$0xff]
    %v49 = vld [vmem:[%s1 + $0x8] sm:$0xff]
    %v50 = vld [vmem:[%s1 + $0x10] sm:$0x1]
    %v51 = vld [vmem:[%s1 + $0x18] sm:$0xff]
    %v52 = vld [vmem:[%s1 + $0x20] sm:$0xff]
    %v53 = vld [vmem:[%s1 + $0x28] sm:$0xff]
    %v54 = vld [vmem:[%s1 + $0x30] sm:$0xff]
    %v55 = vld [vmem:[%s1 + $0x38] sm:$0xff]
    %v56 = vld [vmem:[%s1 + $0x40] sm:$0x1]
    %v57 = vld [vmem:[%s1 + $0x48] sm:$0xff]
    %v58 = vld [vmem:[%s1 + $0x50] sm:$0xff]
    %v59 = vld [vmem:[%s1 + $0x58] sm:$0xff]
    %v60 = vld [vmem:[%s1 + $0x60] sm:$0xff]
    %v61 = vld [vmem:[%s1 + $0x68] sm:$0xff]
    %v62 = vld [vmem:[%s1 + $0x70] sm:$0xff]
    %v63 = vld [vmem:[%s1 + $0x78] sm:$0xff]
    %v64 = vld [vmem:[%s1 + $0x80] sm:$0xff]
    %v65 = vld [vmem:[%s1 + $0x88] sm:$0x1]
    %v66 = vld [vmem:[%s1 + $0x90] sm:$0xff]
    %v67 = vld [vmem:[%s1 + $0x98] sm:$0xff]
    %v68 = vld [vmem:[%s1 + $0xa0] sm:$0x1]
    %v69 = vld [vmem:[%s1 + $0xa8] sm:$0xff]
    %v70 = vld [vmem:[%s1 + $0xb0] sm:$0xff]
    %v71 = vld [vmem:[%s1 + $0xb8] sm:$0xff]
    %v72 = vld [vmem:[%s1 + $0xc0] sm:$0xff]
    %v73 = vld [vmem:[%s1 + $0xc8] sm:$0xff]
    %v74 = vld [vmem:[%s1 + $0xd0] sm:$0xff]
    %v75 = vld [vmem:[%s1 + $0xd8] sm:$0xff]
    %v76 = vld [vmem:[%s1 + $0xe0] sm:$0xff]
    %v77 = vld [vmem:[%s1 + $0xe8] sm:$0x1]
    %v78 = vld [vmem:[%s1 + $0xf0] sm:$0xff]
    %v79 = vld [vmem:[%s1 + $0xf8] sm:$0xff]
    %v80 = vld [vmem:[%s1 + $0x100] sm:$0x1]
    %v81 = vlaneseq
    %v82 = vshrl.u32 %v81, 7
    %v83 = vsub.s32 0, %v82
    %v84 = vrot.slane %v50, %v83
    %vm85 = vcmask 130048
    %v87 = vsel %vm85, %v12, 0
    %v90 = vsel %vm85, %v13, 0
    %92 = vmatprep.subr.mxu0 0.0
    %93 = vmatpush1.msra.mxu0 %v48
    %94 = vmatprep.subr.mxu0 0.0
    %95 = vmatpush1.msra.mxu0 %v49
    %96 = vmatprep.subr.mxu0 0.0
    %97 = vmatpush1.msra.mxu0 0.0
    %98 = vmatprep.subr.mxu0 0.0
    %99 = vmatpush1.msra.mxu0 0.0
    %100 = vmatprep.subr.mxu0 0.0
    %101 = vmatpush1.msra.mxu0 0.0
    %102 = vmatprep.subr.mxu0 0.0
    %103 = vmatpush1.msra.mxu0 0.0
    %104 = vmatprep.subr.mxu0 0.0
    %105 = vmatpush1.msra.mxu0 0.0
    %106 = vmatprep.subr.mxu0 0.0
    %107 = vmatpush1.msra.mxu0 0.0
    %108 = vmatprep.subr.mxu0 0.0
    %109 = vmatpush1.msra.mxu0 0.0
    %110 = vmatprep.subr.mxu0 0.0
    %111 = vmatpush1.msra.mxu0 0.0
    %112 = vmatprep.subr.mxu0 0.0
    %113 = vmatpush1.msra.mxu0 0.0
    %114 = vmatprep.subr.mxu0 0.0
    %115 = vmatpush1.msra.mxu0 0.0
    %116 = vmatprep.subr.mxu0 0.0
    %117 = vmatpush1.msra.mxu0 0.0
    %118 = vmatprep.subr.mxu0 0.0
    %119 = vmatpush1.msra.mxu0 0.0
    %120 = vmatprep.subr.mxu0 0.0
    %121 = vmatpush1.msra.mxu0 0.0
    %122 = vmatprep.subr.mxu0 0.0
    %123 = vmatpush1.msra.mxu0 0.0
    %124 = vmatprep.subr.mxu0 0.0
    %125 = vmatpush1.msra.mxu0 0.0
    %126 = vmatprep.subr.mxu0 0.0
    %127 = vmatpush1.msra.mxu0 0.0
    %128 = vmatprep.subr.mxu0 0.0
    %129 = vmatpush1.msra.mxu0 0.0
    %130 = vmatprep.subr.mxu0 0.0
    %131 = vmatpush1.msra.mxu0 0.0
    %132 = vmatprep.subr.mxu0 0.0
    %133 = vmatpush1.msra.mxu0 0.0
    %134 = vmatprep.subr.mxu0 0.0
    %135 = vmatpush1.msra.mxu0 0.0
    %136 = vmatprep.subr.mxu0 0.0
    %137 = vmatpush1.msra.mxu0 0.0
    %138 = vmatprep.subr.mxu0 0.0
    %139 = vmatpush1.msra.mxu0 0.0
    %140 = vmatprep.subr.mxu0 0.0
    %141 = vmatpush1.msra.mxu0 0.0
    %142 = vmatprep.subr.mxu0 0.0
    %143 = vmatpush1.msra.mxu0 0.0
    %144 = vmatprep.subr.mxu0 0.0
    %145 = vmatpush1.msra.mxu0 0.0
    %146 = vmatprep.subr.mxu0 0.0
    %147 = vmatpush1.msra.mxu0 0.0
    %148 = vmatprep.subr.mxu0 0.0
    %149 = vmatpush1.msra.mxu0 0.0
    %150 = vmatprep.subr.mxu0 0.0
    %151 = vmatpush1.msra.mxu0 0.0
    %152 = vmatprep.subr.mxu0 0.0
    %153 = vmatpush1.msra.mxu0 0.0
    %154 = vmatprep.subr.mxu0 0.0
    %155 = vmatpush1.msra.mxu0 0.0
    %156 = vmatprep.mubr.f32.mxu0 0.0
    %157 = vmatmul.mubr.f32.gmra.mrb[0].mxu0 %v87
    %v158 = vpop.f32.mrb[0].mxu0
    %v159 = vadd.f32 %v84, %v158
    %v160 = vpop.f32.mrb[0].mxu0
    %161 = vmatprep.mubr.f32.mxu0 0.0
    %162 = vmatmul.mubr.f32.gmra.mrb[0].mxu0 %v90
    %v163 = vpop.f32.mrb[0].mxu0
    %v164 = vadd.f32 %v84, %v163
    %v165 = vpop.f32.mrb[0].mxu0
    %166 = vdwg.mxu0
    %v167 = vmax.f32 %v159, 0.0
    %v168 = vmax.f32 %v164, 0.0
    %vm169 = vcmask 64512
    %v171 = vsel %vm169, %v167, 0
    %v174 = vsel %vm169, %v168, 0
    %176 = vmatprep.subr.mxu0 0.0
    %177 = vmatpush1.msra.mxu0 %v51
    %178 = vmatprep.subr.mxu0 0.0
    %179 = vmatpush1.msra.mxu0 0.0
    %180 = vmatprep.subr.mxu0 0.0
    %181 = vmatpush1.msra.mxu0 0.0
    %182 = vmatprep.subr.mxu0 0.0
    %183 = vmatpush1.msra.mxu0 0.0
    %184 = vmatprep.subr.mxu0 0.0
    %185 = vmatpush1.msra.mxu0 0.0
    %186 = vmatprep.subr.mxu0 0.0
    %187 = vmatpush1.msra.mxu0 0.0
    %188 = vmatprep.subr.mxu0 0.0
    %189 = vmatpush1.msra.mxu0 0.0
    %190 = vmatprep.subr.mxu0 0.0
    %191 = vmatpush1.msra.mxu0 0.0
    %192 = vmatprep.subr.mxu0 0.0
    %193 = vmatpush1.msra.mxu0 0.0
    %194 = vmatprep.subr.mxu0 0.0
    %195 = vmatpush1.msra.mxu0 0.0
    %196 = vmatprep.subr.mxu0 0.0
    %197 = vmatpush1.msra.mxu0 0.0
    %198 = vmatprep.subr.mxu0 0.0
    %199 = vmatpush1.msra.mxu0 0.0
    %200 = vmatprep.subr.mxu0 0.0
    %201 = vmatpush1.msra.mxu0 0.0
    %202 = vmatprep.subr.mxu0 0.0
    %203 = vmatpush1.msra.mxu0 0.0
    %204 = vmatprep.subr.mxu0 0.0
    %205 = vmatpush1.msra.mxu0 0.0
    %206 = vmatprep.subr.mxu0 0.0
    %207 = vmatpush1.msra.mxu0 0.0
    %208 = vmatprep.subr.mxu0 0.0
    %209 = vmatpush1.msra.mxu0 0.0
    %210 = vmatprep.subr.mxu0 0.0
    %211 = vmatpush1.msra.mxu0 0.0
    %212 = vmatprep.subr.mxu0 0.0
    %213 = vmatpush1.msra.mxu0 0.0
    %214 = vmatprep.subr.mxu0 0.0
    %215 = vmatpush1.msra.mxu0 0.0
    %216 = vmatprep.subr.mxu0 0.0
    %217 = vmatpush1.msra.mxu0 0.0
    %218 = vmatprep.subr.mxu0 0.0
    %219 = vmatpush1.msra.mxu0 0.0
    %220 = vmatprep.subr.mxu0 0.0
    %221 = vmatpush1.msra.mxu0 0.0
    %222 = vmatprep.subr.mxu0 0.0
    %223 = vmatpush1.msra.mxu0 0.0
    %224 = vmatprep.subr.mxu0 0.0
    %225 = vmatpush1.msra.mxu0 0.0
    %226 = vmatprep.subr.mxu0 0.0
    %227 = vmatpush1.msra.mxu0 0.0
    %228 = vmatprep.subr.mxu0 0.0
    %229 = vmatpush1.msra.mxu0 0.0
    %230 = vmatprep.subr.mxu0 0.0
    %231 = vmatpush1.msra.mxu0 0.0
    %232 = vmatprep.subr.mxu0 0.0
    %233 = vmatpush1.msra.mxu0 0.0
    %234 = vmatprep.subr.mxu0 0.0
    %235 = vmatpush1.msra.mxu0 0.0
    %236 = vmatprep.subr.mxu0 0.0
    %237 = vmatpush1.msra.mxu0 0.0
    %238 = vmatprep.subr.mxu0 0.0
    %239 = vmatpush1.msra.mxu0 0.0
    %240 = vmatprep.mubr.f32.mxu0 0.0
    %241 = vmatmul.mubr.f32.gmra.mrb[0].mxu0 %v171
    %v242 = vpop.f32.mrb[0].mxu0
    %v243 = vadd.f32 0.0, %v242
    %v244 = vpop.f32.mrb[0].mxu0
    %245 = vmatprep.mubr.f32.mxu0 0.0
    %246 = vmatmul.mubr.f32.gmra.mrb[0].mxu0 %v174
    %v247 = vpop.f32.mrb[0].mxu0
    %v248 = vadd.f32 0.0, %v247
    %v249 = vpop.f32.mrb[0].mxu0
    %250 = vdwg.mxu0
    %251 = vmatprep.subr.mxu0 0.0
    %252 = vmatpush1.msra.mxu0 %v52
    %253 = vmatprep.subr.mxu0 0.0
    %254 = vmatpush1.msra.mxu0 0.0
    %255 = vmatprep.subr.mxu0 0.0
    %256 = vmatpush1.msra.mxu0 0.0
    %257 = vmatprep.subr.mxu0 0.0
    %258 = vmatpush1.msra.mxu0 0.0
    %259 = vmatprep.subr.mxu0 0.0
    %260 = vmatpush1.msra.mxu0 0.0
    %261 = vmatprep.subr.mxu0 0.0
    %262 = vmatpush1.msra.mxu0 0.0
    %263 = vmatprep.subr.mxu0 0.0
    %264 = vmatpush1.msra.mxu0 0.0
    %265 = vmatprep.subr.mxu0 0.0
    %266 = vmatpush1.msra.mxu0 0.0
    %267 = vmatprep.subr.mxu0 0.0
    %268 = vmatpush1.msra.mxu0 0.0
    %269 = vmatprep.subr.mxu0 0.0
    %270 = vmatpush1.msra.mxu0 0.0
    %271 = vmatprep.subr.mxu0 0.0
    %272 = vmatpush1.msra.mxu0 0.0
    %273 = vmatprep.subr.mxu0 0.0
    %274 = vmatpush1.msra.mxu0 0.0
    %275 = vmatprep.subr.mxu0 0.0
    %276 = vmatpush1.msra.mxu0 0.0
    %277 = vmatprep.subr.mxu0 0.0
    %278 = vmatpush1.msra.mxu0 0.0
    %279 = vmatprep.subr.mxu0 0.0
    %280 = vmatpush1.msra.mxu0 0.0
    %281 = vmatprep.subr.mxu0 0.0
    %282 = vmatpush1.msra.mxu0 0.0
    %283 = vmatprep.subr.mxu0 0.0
    %284 = vmatpush1.msra.mxu0 0.0
    %285 = vmatprep.subr.mxu0 0.0
    %286 = vmatpush1.msra.mxu0 0.0
    %287 = vmatprep.subr.mxu0 0.0
    %288 = vmatpush1.msra.mxu0 0.0
    %289 = vmatprep.subr.mxu0 0.0
    %290 = vmatpush1.msra.mxu0 0.0
    %291 = vmatprep.subr.mxu0 0.0
    %292 = vmatpush1.msra.mxu0 0.0
    %293 = vmatprep.subr.mxu0 0.0
    %294 = vmatpush1.msra.mxu0 0.0
    %295 = vmatprep.subr.mxu0 0.0
    %296 = vmatpush1.msra.mxu0 0.0
    %297 = vmatprep.subr.mxu0 0.0
    %298 = vmatpush1.msra.mxu0 0.0
    %299 = vmatprep.subr.mxu0 0.0
    %300 = vmatpush1.msra.mxu0 0.0
    %301 = vmatprep.subr.mxu0 0.0
    %302 = vmatpush1.msra.mxu0 0.0
    %303 = vmatprep.subr.mxu0 0.0
    %304 = vmatpush1.msra.mxu0 0.0
    %305 = vmatprep.subr.mxu0 0.0
    %306 = vmatpush1.msra.mxu0 0.0
    %307 = vmatprep.subr.mxu0 0.0
    %308 = vmatpush1.msra.mxu0 0.0
    %309 = vmatprep.subr.mxu0 0.0
    %310 = vmatpush1.msra.mxu0 0.0
    %311 = vmatprep.subr.mxu0 0.0
    %312 = vmatpush1.msra.mxu0 0.0
    %313 = vmatprep.subr.mxu0 0.0
    %314 = vmatpush1.msra.mxu0 0.0
    %315 = vmatprep.mubr.f32.mxu0 0.0
    %316 = vmatmul.mubr.f32.gmra.mrb[0].mxu0 %v171
    %v317 = vpop.f32.mrb[0].mxu0
    %v318 = vadd.f32 0.0, %v317
    %v319 = vpop.f32.mrb[0].mxu0
    %320 = vmatprep.mubr.f32.mxu0 0.0
    %321 = vmatmul.mubr.f32.gmra.mrb[0].mxu0 %v174
    %v322 = vpop.f32.mrb[0].mxu0
    %v323 = vadd.f32 0.0, %v322
    %v324 = vpop.f32.mrb[0].mxu0
    %325 = vdwg.mxu0
    %326 = vmatprep.subr.mxu0 0.0
    %327 = vmatpush1.msra.mxu0 %v53
    %328 = vmatprep.subr.mxu0 0.0
    %329 = vmatpush1.msra.mxu0 0.0
    %330 = vmatprep.subr.mxu0 0.0
    %331 = vmatpush1.msra.mxu0 0.0
    %332 = vmatprep.subr.mxu0 0.0
    %333 = vmatpush1.msra.mxu0 0.0
    %334 = vmatprep.subr.mxu0 0.0
    %335 = vmatpush1.msra.mxu0 0.0
    %336 = vmatprep.subr.mxu0 0.0
    %337 = vmatpush1.msra.mxu0 0.0
    %338 = vmatprep.subr.mxu0 0.0
    %339 = vmatpush1.msra.mxu0 0.0
    %340 = vmatprep.subr.mxu0 0.0
    %341 = vmatpush1.msra.mxu0 0.0
    %342 = vmatprep.subr.mxu0 0.0
    %343 = vmatpush1.msra.mxu0 0.0
    %344 = vmatprep.subr.mxu0 0.0
    %345 = vmatpush1.msra.mxu0 0.0
    %346 = vmatprep.subr.mxu0 0.0
    %347 = vmatpush1.msra.mxu0 0.0
    %348 = vmatprep.subr.mxu0 0.0
    %349 = vmatpush1.msra.mxu0 0.0
    %350 = vmatprep.subr.mxu0 0.0
    %351 = vmatpush1.msra.mxu0 0.0
    %352 = vmatprep.subr.mxu0 0.0
    %353 = vmatpush1.msra.mxu0 0.0
    %354 = vmatprep.subr.mxu0 0.0
    %355 = vmatpush1.msra.mxu0 0.0
    %356 = vmatprep.subr.mxu0 0.0
    %357 = vmatpush1.msra.mxu0 0.0
    %358 = vmatprep.subr.mxu0 0.0
    %359 = vmatpush1.msra.mxu0 0.0
    %360 = vmatprep.subr.mxu0 0.0
    %361 = vmatpush1.msra.mxu0 0.0
    %362 = vmatprep.subr.mxu0 0.0
    %363 = vmatpush1.msra.mxu0 0.0
    %364 = vmatprep.subr.mxu0 0.0
    %365 = vmatpush1.msra.mxu0 0.0
    %366 = vmatprep.subr.mxu0 0.0
    %367 = vmatpush1.msra.mxu0 0.0
    %368 = vmatprep.subr.mxu0 0.0
    %369 = vmatpush1.msra.mxu0 0.0
    %370 = vmatprep.subr.mxu0 0.0
    %371 = vmatpush1.msra.mxu0 0.0
    %372 = vmatprep.subr.mxu0 0.0
    %373 = vmatpush1.msra.mxu0 0.0
    %374 = vmatprep.subr.mxu0 0.0
    %375 = vmatpush1.msra.mxu0 0.0
    %376 = vmatprep.subr.mxu0 0.0
    %377 = vmatpush1.msra.mxu0 0.0
    %378 = vmatprep.subr.mxu0 0.0
    %379 = vmatpush1.msra.mxu0 0.0
    %380 = vmatprep.subr.mxu0 0.0
    %381 = vmatpush1.msra.mxu0 0.0
    %382 = vmatprep.subr.mxu0 0.0
    %383 = vmatpush1.msra.mxu0 0.0
    %384 = vmatprep.subr.mxu0 0.0
    %385 = vmatpush1.msra.mxu0 0.0
    %386 = vmatprep.subr.mxu0 0.0
    %387 = vmatpush1.msra.mxu0 0.0
    %388 = vmatprep.subr.mxu0 0.0
    %389 = vmatpush1.msra.mxu0 0.0
    %390 = vmatprep.mubr.f32.mxu0 0.0
    %391 = vmatmul.mubr.f32.gmra.mrb[0].mxu0 %v171
    %v392 = vpop.f32.mrb[0].mxu0
    %v393 = vadd.f32 0.0, %v392
    %v394 = vpop.f32.mrb[0].mxu0
    %395 = vmatprep.mubr.f32.mxu0 0.0
    %396 = vmatmul.mubr.f32.gmra.mrb[0].mxu0 %v174
    %v397 = vpop.f32.mrb[0].mxu0
    %v398 = vadd.f32 0.0, %v397
    %v399 = vpop.f32.mrb[0].mxu0
    %400 = vdwg.mxu0
    %v402 = vsel %vm85, %v14, 0
    %v405 = vsel %vm85, %v15, 0
    %407 = vmatprep.subr.mxu0 0.0
    %408 = vmatpush1.msra.mxu0 %v54
    %409 = vmatprep.subr.mxu0 0.0
    %410 = vmatpush1.msra.mxu0 %v55
    %411 = vmatprep.subr.mxu0 0.0
    %412 = vmatpush1.msra.mxu0 0.0
    %413 = vmatprep.subr.mxu0 0.0
    %414 = vmatpush1.msra.mxu0 0.0
    %415 = vmatprep.subr.mxu0 0.0
    %416 = vmatpush1.msra.mxu0 0.0
    %417 = vmatprep.subr.mxu0 0.0
    %418 = vmatpush1.msra.mxu0 0.0
    %419 = vmatprep.subr.mxu0 0.0
    %420 = vmatpush1.msra.mxu0 0.0
    %421 = vmatprep.subr.mxu0 0.0
    %422 = vmatpush1.msra.mxu0 0.0
    %423 = vmatprep.subr.mxu0 0.0
    %424 = vmatpush1.msra.mxu0 0.0
    %425 = vmatprep.subr.mxu0 0.0
    %426 = vmatpush1.msra.mxu0 0.0
    %427 = vmatprep.subr.mxu0 0.0
    %428 = vmatpush1.msra.mxu0 0.0
    %429 = vmatprep.subr.mxu0 0.0
    %430 = vmatpush1.msra.mxu0 0.0
    %431 = vmatprep.subr.mxu0 0.0
    %432 = vmatpush1.msra.mxu0 0.0
    %433 = vmatprep.subr.mxu0 0.0
    %434 = vmatpush1.msra.mxu0 0.0
    %435 = vmatprep.subr.mxu0 0.0
    %436 = vmatpush1.msra.mxu0 0.0
    %437 = vmatprep.subr.mxu0 0.0
    %438 = vmatpush1.msra.mxu0 0.0
    %439 = vmatprep.subr.mxu0 0.0
    %440 = vmatpush1.msra.mxu0 0.0
    %441 = vmatprep.subr.mxu0 0.0
    %442 = vmatpush1.msra.mxu0 0.0
    %443 = vmatprep.subr.mxu0 0.0
    %444 = vmatpush1.msra.mxu0 0.0
    %445 = vmatprep.subr.mxu0 0.0
    %446 = vmatpush1.msra.mxu0 0.0
    %447 = vmatprep.subr.mxu0 0.0
    %448 = vmatpush1.msra.mxu0 0.0
    %449 = vmatprep.subr.mxu0 0.0
    %450 = vmatpush1.msra.mxu0 0.0
    %451 = vmatprep.subr.mxu0 0.0
    %452 = vmatpush1.msra.mxu0 0.0
    %453 = vmatprep.subr.mxu0 0.0
    %454 = vmatpush1.msra.mxu0 0.0
    %455 = vmatprep.subr.mxu0 0.0
    %456 = vmatpush1.msra.mxu0 0.0
    %457 = vmatprep.subr.mxu0 0.0
    %458 = vmatpush1.msra.mxu0 0.0
    %459 = vmatprep.subr.mxu0 0.0
    %460 = vmatpush1.msra.mxu0 0.0
    %461 = vmatprep.subr.mxu0 0.0
    %462 = vmatpush1.msra.mxu0 0.0
    %463 = vmatprep.subr.mxu0 0.0
    %464 = vmatpush1.msra.mxu0 0.0
    %465 = vmatprep.subr.mxu0 0.0
    %466 = vmatpush1.msra.mxu0 0.0
    %467 = vmatprep.subr.mxu0 0.0
    %468 = vmatpush1.msra.mxu0 0.0
    %469 = vmatprep.subr.mxu0 0.0
    %470 = vmatpush1.msra.mxu0 0.0
    %471 = vmatprep.mubr.f32.mxu0 0.0
    %472 = vmatmul.mubr.f32.gmra.mrb[0].mxu0 %v402
    %v473 = vpop.f32.mrb[0].mxu0
    %v474 = vadd.f32 0.0, %v473
    %v475 = vpop.f32.mrb[0].mxu0
    %476 = vmatprep.mubr.f32.mxu0 0.0
    %477 = vmatmul.mubr.f32.gmra.mrb[0].mxu0 %v405
    %v478 = vpop.f32.mrb[0].mxu0
    %v479 = vadd.f32 0.0, %v478
    %v480 = vpop.f32.mrb[0].mxu0
    %481 = vdwg.mxu0
    %v484 = vcombine.high %v474, %v474
    %v486 = vunpack.c.l.s4 1966171168
    %v487 = vunpack.c.0.s8 %v486
    %v488 = vlaneseq
    %v489 = vshrl.u32 %v488, 7
    %v490 = vsub.s32 %v487, %v489
    %v491 = vrot.slane %v474, %v490
    %v493 = vunpack.c.l.s4 1966171168
    %v494 = vunpack.c.0.s8 %v493
    %v495 = vlaneseq
    %v496 = vshrl.u32 %v495, 7
    %v497 = vsub.s32 %v494, %v496
    %v498 = vrot.slane %v484, %v497
    %v499 = vcombine.high %v491, %v491
    %v500 = vcombine.high %v498, %v498
    %v502 = vunpack.c.l.s4 1966171168
    %v503 = vunpack.c.0.s8 %v502
    %v504 = vlaneseq
    %v505 = vshrl.u32 %v504, 7
    %v506 = vsub.s32 %v503, %v505
    %v507 = vrot.slane %v491, %v506
    %v509 = vunpack.c.l.s4 1966171168
    %v510 = vunpack.c.0.s8 %v509
    %v511 = vlaneseq
    %v512 = vshrl.u32 %v511, 7
    %v513 = vsub.s32 %v510, %v512
    %v514 = vrot.slane %v498, %v513
    %v516 = vunpack.c.l.s4 1966171168
    %v517 = vunpack.c.0.s8 %v516
    %v518 = vlaneseq
    %v519 = vshrl.u32 %v518, 7
    %v520 = vsub.s32 %v517, %v519
    %v521 = vrot.slane %v499, %v520
    %v523 = vunpack.c.l.s4 1966171168
    %v524 = vunpack.c.0.s8 %v523
    %v525 = vlaneseq
    %v526 = vshrl.u32 %v525, 7
    %v527 = vsub.s32 %v524, %v526
    %v528 = vrot.slane %v500, %v527
    %v529 = vcombine.high %v507, %v507
    %v530 = vcombine.high %v514, %v514
    %v531 = vcombine.high %v521, %v521
    %v532 = vcombine.high %v528, %v528
    %v533 = vcombine.high %v479, %v479
    %v535 = vunpack.c.l.s4 1966171168
    %v536 = vunpack.c.0.s8 %v535
    %v537 = vlaneseq
    %v538 = vshrl.u32 %v537, 7
    %v539 = vsub.s32 %v536, %v538
    %v540 = vrot.slane %v479, %v539
    %v542 = vunpack.c.l.s4 1966171168
    %v543 = vunpack.c.0.s8 %v542
    %v544 = vlaneseq
    %v545 = vshrl.u32 %v544, 7
    %v546 = vsub.s32 %v543, %v545
    %v547 = vrot.slane %v533, %v546
    %v548 = vcombine.high %v540, %v540
    %v549 = vcombine.high %v547, %v547
    %v551 = vunpack.c.l.s4 1966171168
    %v552 = vunpack.c.0.s8 %v551
    %v553 = vlaneseq
    %v554 = vshrl.u32 %v553, 7
    %v555 = vsub.s32 %v552, %v554
    %v556 = vrot.slane %v540, %v555
    %v558 = vunpack.c.l.s4 1966171168
    %v559 = vunpack.c.0.s8 %v558
    %v560 = vlaneseq
    %v561 = vshrl.u32 %v560, 7
    %v562 = vsub.s32 %v559, %v561
    %v563 = vrot.slane %v547, %v562
    %v565 = vunpack.c.l.s4 1966171168
    %v566 = vunpack.c.0.s8 %v565
    %v567 = vlaneseq
    %v568 = vshrl.u32 %v567, 7
    %v569 = vsub.s32 %v566, %v568
    %v570 = vrot.slane %v548, %v569
    %v572 = vunpack.c.l.s4 1966171168
    %v573 = vunpack.c.0.s8 %v572
    %v574 = vlaneseq
    %v575 = vshrl.u32 %v574, 7
    %v576 = vsub.s32 %v573, %v575
    %v577 = vrot.slane %v549, %v576
    %v578 = vcombine.high %v556, %v556
    %v579 = vcombine.high %v563, %v563
    %v580 = vcombine.high %v570, %v570
    %v581 = vcombine.high %v577, %v577
    %v582 = vlaneseq
    %v583 = vshrl.u32 %v582, 7
    %v584 = vsub.s32 0, %v583
    %v585 = vrot.slane %v507, %v584
    %v586 = vlaneseq
    %v587 = vshrl.u32 %v586, 7
    %v588 = vsub.s32 0, %v587
    %v589 = vrot.slane %v521, %v588
    %v590 = vlaneseq
    %v591 = vshrl.u32 %v590, 7
    %v592 = vsub.s32 0, %v591
    %v593 = vrot.slane %v529, %v592
    %v594 = vlaneseq
    %v595 = vshrl.u32 %v594, 7
    %v596 = vsub.s32 0, %v595
    %v597 = vrot.slane %v531, %v596
    %v598 = vlaneseq
    %v599 = vshrl.u32 %v598, 7
    %v600 = vsub.s32 0, %v599
    %v601 = vrot.slane %v514, %v600
    %v602 = vlaneseq
    %v603 = vshrl.u32 %v602, 7
    %v604 = vsub.s32 0, %v603
    %v605 = vrot.slane %v528, %v604
    %v606 = vlaneseq
    %v607 = vshrl.u32 %v606, 7
    %v608 = vsub.s32 0, %v607
    %v609 = vrot.slane %v530, %v608
    %v610 = vlaneseq
    %v611 = vshrl.u32 %v610, 7
    %v612 = vsub.s32 0, %v611
    %v613 = vrot.slane %v532, %v612
    %v614 = vlaneseq
    %v615 = vshrl.u32 %v614, 7
    %v616 = vsub.s32 0, %v615
    %v617 = vrot.slane %v556, %v616
    %v618 = vlaneseq
    %v619 = vshrl.u32 %v618, 7
    %v620 = vsub.s32 0, %v619
    %v621 = vrot.slane %v570, %v620
    %v622 = vlaneseq
    %v623 = vshrl.u32 %v622, 7
    %v624 = vsub.s32 0, %v623
    %v625 = vrot.slane %v578, %v624
    %v626 = vlaneseq
    %v627 = vshrl.u32 %v626, 7
    %v628 = vsub.s32 0, %v627
    %v629 = vrot.slane %v580, %v628
    %v630 = vlaneseq
    %v631 = vshrl.u32 %v630, 7
    %v632 = vsub.s32 0, %v631
    %v633 = vrot.slane %v563, %v632
    %v634 = vlaneseq
    %v635 = vshrl.u32 %v634, 7
    %v636 = vsub.s32 0, %v635
    %v637 = vrot.slane %v577, %v636
    %v638 = vlaneseq
    %v639 = vshrl.u32 %v638, 7
    %v640 = vsub.s32 0, %v639
    %v641 = vrot.slane %v579, %v640
    %v642 = vlaneseq
    %v643 = vshrl.u32 %v642, 7
    %v644 = vsub.s32 0, %v643
    %v645 = vrot.slane %v581, %v644
    %v662 = vsub.f32 %v585, %v474
    %v663 = vsub.f32 %v585, %v479
    %v664 = vsub.f32 %v589, %v474
    %v665 = vsub.f32 %v589, %v479
    %v666 = vsub.f32 %v593, %v474
    %v667 = vsub.f32 %v593, %v479
    %v668 = vsub.f32 %v597, %v474
    %v669 = vsub.f32 %v597, %v479
    %v670 = vsub.f32 %v601, %v474
    %v671 = vsub.f32 %v601, %v479
    %v672 = vsub.f32 %v605, %v474
    %v673 = vsub.f32 %v605, %v479
    %v674 = vsub.f32 %v609, %v474
    %v675 = vsub.f32 %v609, %v479
    %v676 = vsub.f32 %v613, %v474
    %v677 = vsub.f32 %v613, %v479
    %v678 = vsub.f32 %v617, %v474
    %v679 = vsub.f32 %v617, %v479
    %v680 = vsub.f32 %v621, %v474
    %v681 = vsub.f32 %v621, %v479
    %v682 = vsub.f32 %v625, %v474
    %v683 = vsub.f32 %v625, %v479
    %v684 = vsub.f32 %v629, %v474
    %v685 = vsub.f32 %v629, %v479
    %v686 = vsub.f32 %v633, %v474
    %v687 = vsub.f32 %v633, %v479
    %v688 = vsub.f32 %v637, %v474
    %v689 = vsub.f32 %v637, %v479
    %v690 = vsub.f32 %v641, %v474
    %v691 = vsub.f32 %v641, %v479
    %v692 = vsub.f32 %v645, %v474
    %v693 = vsub.f32 %v645, %v479
    %v694 = vlaneseq
    %v695 = vshrl.u32 %v694, 7
    %v696 = vsub.s32 0, %v695
    %v697 = vrot.slane %v56, %v696
    %v698 = vadd.f32 %v662, %v697
    %v699 = vadd.f32 %v663, %v697
    %v700 = vadd.f32 %v664, %v697
    %v701 = vadd.f32 %v665, %v697
    %v702 = vadd.f32 %v666, %v697
    %v703 = vadd.f32 %v667, %v697
    %v704 = vadd.f32 %v668, %v697
    %v705 = vadd.f32 %v669, %v697
    %v706 = vadd.f32 %v670, %v697
    %v707 = vadd.f32 %v671, %v697
    %v708 = vadd.f32 %v672, %v697
    %v709 = vadd.f32 %v673, %v697
    %v710 = vadd.f32 %v674, %v697
    %v711 = vadd.f32 %v675, %v697
    %v712 = vadd.f32 %v676, %v697
    %v713 = vadd.f32 %v677, %v697
    %v714 = vadd.f32 %v678, %v697
    %v715 = vadd.f32 %v679, %v697
    %v716 = vadd.f32 %v680, %v697
    %v717 = vadd.f32 %v681, %v697
    %v718 = vadd.f32 %v682, %v697
    %v719 = vadd.f32 %v683, %v697
    %v720 = vadd.f32 %v684, %v697
    %v721 = vadd.f32 %v685, %v697
    %v722 = vadd.f32 %v686, %v697
    %v723 = vadd.f32 %v687, %v697
    %v724 = vadd.f32 %v688, %v697
    %v725 = vadd.f32 %v689, %v697
    %v726 = vadd.f32 %v690, %v697
    %v727 = vadd.f32 %v691, %v697
    %v728 = vadd.f32 %v692, %v697
    %v729 = vadd.f32 %v693, %v697
    %v730 = vmax.f32 %v698, 0.0
    %v731 = vmax.f32 %v699, 0.0
    %v732 = vmax.f32 %v700, 0.0
    %v733 = vmax.f32 %v701, 0.0
    %v734 = vmax.f32 %v702, 0.0
    %v735 = vmax.f32 %v703, 0.0
    %v736 = vmax.f32 %v704, 0.0
    %v737 = vmax.f32 %v705, 0.0
    %v738 = vmax.f32 %v706, 0.0
    %v739 = vmax.f32 %v707, 0.0
    %v740 = vmax.f32 %v708, 0.0
    %v741 = vmax.f32 %v709, 0.0
    %v742 = vmax.f32 %v710, 0.0
    %v743 = vmax.f32 %v711, 0.0
    %v744 = vmax.f32 %v712, 0.0
    %v745 = vmax.f32 %v713, 0.0
    %v746 = vmax.f32 %v714, 0.0
    %v747 = vmax.f32 %v715, 0.0
    %v748 = vmax.f32 %v716, 0.0
    %v749 = vmax.f32 %v717, 0.0
    %v750 = vmax.f32 %v718, 0.0
    %v751 = vmax.f32 %v719, 0.0
    %v752 = vmax.f32 %v720, 0.0
    %v753 = vmax.f32 %v721, 0.0
    %v754 = vmax.f32 %v722, 0.0
    %v755 = vmax.f32 %v723, 0.0
    %v756 = vmax.f32 %v724, 0.0
    %v757 = vmax.f32 %v725, 0.0
    %v758 = vmax.f32 %v726, 0.0
    %v759 = vmax.f32 %v727, 0.0
    %v760 = vmax.f32 %v728, 0.0
    %v761 = vmax.f32 %v729, 0.0
    %v762 = vlaneseq
    %v763 = vshrl.u32 %v762, 7
    %v764 = vsub.s32 0, %v763
    %v765 = vrot.slane %v65, %v764
    %vm766 = vcmask 523264
    %v768 = vsel %vm766, %v730, 0
    %v771 = vsel %vm766, %v731, 0
    %v774 = vsel %vm766, %v732, 0
    %v777 = vsel %vm766, %v733, 0
    %v780 = vsel %vm766, %v734, 0
    %v783 = vsel %vm766, %v735, 0
    %v786 = vsel %vm766, %v736, 0
    %v789 = vsel %vm766, %v737, 0
    %v792 = vsel %vm766, %v738, 0
    %v795 = vsel %vm766, %v739, 0
    %v798 = vsel %vm766, %v740, 0
    %v801 = vsel %vm766, %v741, 0
    %v804 = vsel %vm766, %v742, 0
    %v807 = vsel %vm766, %v743, 0
    %v810 = vsel %vm766, %v744, 0
    %v813 = vsel %vm766, %v745, 0
    %v816 = vsel %vm766, %v746, 0
    %v819 = vsel %vm766, %v747, 0
    %v822 = vsel %vm766, %v748, 0
    %v825 = vsel %vm766, %v749, 0
    %v828 = vsel %vm766, %v750, 0
    %v831 = vsel %vm766, %v751, 0
    %v834 = vsel %vm766, %v752, 0
    %v837 = vsel %vm766, %v753, 0
    %v840 = vsel %vm766, %v754, 0
    %v843 = vsel %vm766, %v755, 0
    %v846 = vsel %vm766, %v756, 0
    %v849 = vsel %vm766, %v757, 0
    %v852 = vsel %vm766, %v758, 0
    %v855 = vsel %vm766, %v759, 0
    %v858 = vsel %vm766, %v760, 0
    %v861 = vsel %vm766, %v761, 0
    %863 = vmatprep.subr.mxu0 0.0
    %864 = vmatpush1.msra.mxu0 %v57
    %865 = vmatprep.subr.mxu0 0.0
    %866 = vmatpush1.msra.mxu0 %v58
    %867 = vmatprep.subr.mxu0 0.0
    %868 = vmatpush1.msra.mxu0 %v59
    %869 = vmatprep.subr.mxu0 0.0
    %870 = vmatpush1.msra.mxu0 %v60
    %871 = vmatprep.subr.mxu0 0.0
    %872 = vmatpush1.msra.mxu0 %v61
    %873 = vmatprep.subr.mxu0 0.0
    %874 = vmatpush1.msra.mxu0 %v62
    %875 = vmatprep.subr.mxu0 0.0
    %876 = vmatpush1.msra.mxu0 %v63
    %877 = vmatprep.subr.mxu0 0.0
    %878 = vmatpush1.msra.mxu0 %v64
    %879 = vmatprep.subr.mxu0 0.0
    %880 = vmatpush1.msra.mxu0 0.0
    %881 = vmatprep.subr.mxu0 0.0
    %882 = vmatpush1.msra.mxu0 0.0
    %883 = vmatprep.subr.mxu0 0.0
    %884 = vmatpush1.msra.mxu0 0.0
    %885 = vmatprep.subr.mxu0 0.0
    %886 = vmatpush1.msra.mxu0 0.0
    %887 = vmatprep.subr.mxu0 0.0
    %888 = vmatpush1.msra.mxu0 0.0
    %889 = vmatprep.subr.mxu0 0.0
    %890 = vmatpush1.msra.mxu0 0.0
    %891 = vmatprep.subr.mxu0 0.0
    %892 = vmatpush1.msra.mxu0 0.0
    %893 = vmatprep.subr.mxu0 0.0
    %894 = vmatpush1.msra.mxu0 0.0
    %895 = vmatprep.subr.mxu0 0.0
    %896 = vmatpush1.msra.mxu0 0.0
    %897 = vmatprep.subr.mxu0 0.0
    %898 = vmatpush1.msra.mxu0 0.0
    %899 = vmatprep.subr.mxu0 0.0
    %900 = vmatpush1.msra.mxu0 0.0
    %901 = vmatprep.subr.mxu0 0.0
    %902 = vmatpush1.msra.mxu0 0.0
    %903 = vmatprep.subr.mxu0 0.0
    %904 = vmatpush1.msra.mxu0 0.0
    %905 = vmatprep.subr.mxu0 0.0
    %906 = vmatpush1.msra.mxu0 0.0
    %907 = vmatprep.subr.mxu0 0.0
    %908 = vmatpush1.msra.mxu0 0.0
    %909 = vmatprep.subr.mxu0 0.0
    %910 = vmatpush1.msra.mxu0 0.0
    %911 = vmatprep.subr.mxu0 0.0
    %912 = vmatpush1.msra.mxu0 0.0
    %913 = vmatprep.subr.mxu0 0.0
    %914 = vmatpush1.msra.mxu0 0.0
    %915 = vmatprep.subr.mxu0 0.0
    %916 = vmatpush1.msra.mxu0 0.0
    %917 = vmatprep.subr.mxu0 0.0
    %918 = vmatpush1.msra.mxu0 0.0
    %919 = vmatprep.subr.mxu0 0.0
    %920 = vmatpush1.msra.mxu0 0.0
    %921 = vmatprep.subr.mxu0 0.0
    %922 = vmatpush1.msra.mxu0 0.0
    %923 = vmatprep.subr.mxu0 0.0
    %924 = vmatpush1.msra.mxu0 0.0
    %925 = vmatprep.subr.mxu0 0.0
    %926 = vmatpush1.msra.mxu0 0.0
    %927 = vmatprep.mubr.f32.mxu0 0.0
    %928 = vmatmul.mubr.f32.gmra.mrb[0].mxu0 %v768
    %v929 = vpop.f32.mrb[0].mxu0
    %v930 = vadd.f32 %v765, %v929
    %v931 = vpop.f32.mrb[0].mxu0
    %932 = vmatprep.mubr.f32.mxu0 0.0
    %933 = vmatmul.mubr.f32.gmra.mrb[0].mxu0 %v771
    %v934 = vpop.f32.mrb[0].mxu0
    %v935 = vadd.f32 %v765, %v934
    %v936 = vpop.f32.mrb[0].mxu0
    %937 = vmatprep.mubr.f32.mxu0 0.0
    %938 = vmatmul.mubr.f32.gmra.mrb[0].mxu0 %v774
    %v939 = vpop.f32.mrb[0].mxu0
    %v940 = vadd.f32 %v765, %v939
    %v941 = vpop.f32.mrb[0].mxu0
    %942 = vmatprep.mubr.f32.mxu0 0.0
    %943 = vmatmul.mubr.f32.gmra.mrb[0].mxu0 %v777
    %v944 = vpop.f32.mrb[0].mxu0
    %v945 = vadd.f32 %v765, %v944
    %v946 = vpop.f32.mrb[0].mxu0
    %947 = vmatprep.mubr.f32.mxu0 0.0
    %948 = vmatmul.mubr.f32.gmra.mrb[0].mxu0 %v780
    %v949 = vpop.f32.mrb[0].mxu0
    %v950 = vadd.f32 %v765, %v949
    %v951 = vpop.f32.mrb[0].mxu0
    %952 = vmatprep.mubr.f32.mxu0 0.0
    %953 = vmatmul.mubr.f32.gmra.mrb[0].mxu0 %v783
    %v954 = vpop.f32.mrb[0].mxu0
    %v955 = vadd.f32 %v765, %v954
    %v956 = vpop.f32.mrb[0].mxu0
    %957 = vmatprep.mubr.f32.mxu0 0.0
    %958 = vmatmul.mubr.f32.gmra.mrb[0].mxu0 %v786
    %v959 = vpop.f32.mrb[0].mxu0
    %v960 = vadd.f32 %v765, %v959
    %v961 = vpop.f32.mrb[0].mxu0
    %962 = vmatprep.mubr.f32.mxu0 0.0
    %963 = vmatmul.mubr.f32.gmra.mrb[0].mxu0 %v789
    %v964 = vpop.f32.mrb[0].mxu0
    %v965 = vadd.f32 %v765, %v964
    %v966 = vpop.f32.mrb[0].mxu0
    %967 = vmatprep.mubr.f32.mxu0 0.0
    %968 = vmatmul.mubr.f32.gmra.mrb[0].mxu0 %v792
    %v969 = vpop.f32.mrb[0].mxu0
    %v970 = vadd.f32 %v765, %v969
    %v971 = vpop.f32.mrb[0].mxu0
    %972 = vmatprep.mubr.f32.mxu0 0.0
    %973 = vmatmul.mubr.f32.gmra.mrb[0].mxu0 %v795
    %v974 = vpop.f32.mrb[0].mxu0
    %v975 = vadd.f32 %v765, %v974
    %v976 = vpop.f32.mrb[0].mxu0
    %977 = vmatprep.mubr.f32.mxu0 0.0
    %978 = vmatmul.mubr.f32.gmra.mrb[0].mxu0 %v798
    %v979 = vpop.f32.mrb[0].mxu0
    %v980 = vadd.f32 %v765, %v979
    %v981 = vpop.f32.mrb[0].mxu0
    %982 = vmatprep.mubr.f32.mxu0 0.0
    %983 = vmatmul.mubr.f32.gmra.mrb[0].mxu0 %v801
    %v984 = vpop.f32.mrb[0].mxu0
    %v985 = vadd.f32 %v765, %v984
    %v986 = vpop.f32.mrb[0].mxu0
    %987 = vmatprep.mubr.f32.mxu0 0.0
    %988 = vmatmul.mubr.f32.gmra.mrb[0].mxu0 %v804
    %v989 = vpop.f32.mrb[0].mxu0
    %v990 = vadd.f32 %v765, %v989
    %v991 = vpop.f32.mrb[0].mxu0
    %992 = vmatprep.mubr.f32.mxu0 0.0
    %993 = vmatmul.mubr.f32.gmra.mrb[0].mxu0 %v807
    %v994 = vpop.f32.mrb[0].mxu0
    %v995 = vadd.f32 %v765, %v994
    %v996 = vpop.f32.mrb[0].mxu0
    %997 = vmatprep.mubr.f32.mxu0 0.0
    %998 = vmatmul.mubr.f32.gmra.mrb[0].mxu0 %v810
    %v999 = vpop.f32.mrb[0].mxu0
    %v1000 = vadd.f32 %v765, %v999
    %v1001 = vpop.f32.mrb[0].mxu0
    %1002 = vmatprep.mubr.f32.mxu0 0.0
    %1003 = vmatmul.mubr.f32.gmra.mrb[0].mxu0 %v813
    %v1004 = vpop.f32.mrb[0].mxu0
    %v1005 = vadd.f32 %v765, %v1004
    %v1006 = vpop.f32.mrb[0].mxu0
    %1007 = vmatprep.mubr.f32.mxu0 0.0
    %1008 = vmatmul.mubr.f32.gmra.mrb[0].mxu0 %v816
    %v1009 = vpop.f32.mrb[0].mxu0
    %v1010 = vadd.f32 %v765, %v1009
    %v1011 = vpop.f32.mrb[0].mxu0
    %1012 = vmatprep.mubr.f32.mxu0 0.0
    %1013 = vmatmul.mubr.f32.gmra.mrb[0].mxu0 %v819
    %v1014 = vpop.f32.mrb[0].mxu0
    %v1015 = vadd.f32 %v765, %v1014
    %v1016 = vpop.f32.mrb[0].mxu0
    %1017 = vmatprep.mubr.f32.mxu0 0.0
    %1018 = vmatmul.mubr.f32.gmra.mrb[0].mxu0 %v822
    %v1019 = vpop.f32.mrb[0].mxu0
    %v1020 = vadd.f32 %v765, %v1019
    %v1021 = vpop.f32.mrb[0].mxu0
    %1022 = vmatprep.mubr.f32.mxu0 0.0
    %1023 = vmatmul.mubr.f32.gmra.mrb[0].mxu0 %v825
    %v1024 = vpop.f32.mrb[0].mxu0
    %v1025 = vadd.f32 %v765, %v1024
    %v1026 = vpop.f32.mrb[0].mxu0
    %1027 = vmatprep.mubr.f32.mxu0 0.0
    %1028 = vmatmul.mubr.f32.gmra.mrb[0].mxu0 %v828
    %v1029 = vpop.f32.mrb[0].mxu0
    %v1030 = vadd.f32 %v765, %v1029
    %v1031 = vpop.f32.mrb[0].mxu0
    %1032 = vmatprep.mubr.f32.mxu0 0.0
    %1033 = vmatmul.mubr.f32.gmra.mrb[0].mxu0 %v831
    %v1034 = vpop.f32.mrb[0].mxu0
    %v1035 = vadd.f32 %v765, %v1034
    %v1036 = vpop.f32.mrb[0].mxu0
    %1037 = vmatprep.mubr.f32.mxu0 0.0
    %1038 = vmatmul.mubr.f32.gmra.mrb[0].mxu0 %v834
    %v1039 = vpop.f32.mrb[0].mxu0
    %v1040 = vadd.f32 %v765, %v1039
    %v1041 = vpop.f32.mrb[0].mxu0
    %1042 = vmatprep.mubr.f32.mxu0 0.0
    %1043 = vmatmul.mubr.f32.gmra.mrb[0].mxu0 %v837
    %v1044 = vpop.f32.mrb[0].mxu0
    %v1045 = vadd.f32 %v765, %v1044
    %v1046 = vpop.f32.mrb[0].mxu0
    %1047 = vmatprep.mubr.f32.mxu0 0.0
    %1048 = vmatmul.mubr.f32.gmra.mrb[0].mxu0 %v840
    %v1049 = vpop.f32.mrb[0].mxu0
    %v1050 = vadd.f32 %v765, %v1049
    %v1051 = vpop.f32.mrb[0].mxu0
    %1052 = vmatprep.mubr.f32.mxu0 0.0
    %1053 = vmatmul.mubr.f32.gmra.mrb[0].mxu0 %v843
    %v1054 = vpop.f32.mrb[0].mxu0
    %v1055 = vadd.f32 %v765, %v1054
    %v1056 = vpop.f32.mrb[0].mxu0
    %1057 = vmatprep.mubr.f32.mxu0 0.0
    %1058 = vmatmul.mubr.f32.gmra.mrb[0].mxu0 %v846
    %v1059 = vpop.f32.mrb[0].mxu0
    %v1060 = vadd.f32 %v765, %v1059
    %v1061 = vpop.f32.mrb[0].mxu0
    %1062 = vmatprep.mubr.f32.mxu0 0.0
    %1063 = vmatmul.mubr.f32.gmra.mrb[0].mxu0 %v849
    %v1064 = vpop.f32.mrb[0].mxu0
    %v1065 = vadd.f32 %v765, %v1064
    %v1066 = vpop.f32.mrb[0].mxu0
    %1067 = vmatprep.mubr.f32.mxu0 0.0
    %1068 = vmatmul.mubr.f32.gmra.mrb[0].mxu0 %v852
    %v1069 = vpop.f32.mrb[0].mxu0
    %v1070 = vadd.f32 %v765, %v1069
    %v1071 = vpop.f32.mrb[0].mxu0
    %1072 = vmatprep.mubr.f32.mxu0 0.0
    %1073 = vmatmul.mubr.f32.gmra.mrb[0].mxu0 %v855
    %v1074 = vpop.f32.mrb[0].mxu0
    %v1075 = vadd.f32 %v765, %v1074
    %v1076 = vpop.f32.mrb[0].mxu0
    %1077 = vmatprep.mubr.f32.mxu0 0.0
    %1078 = vmatmul.mubr.f32.gmra.mrb[0].mxu0 %v858
    %v1079 = vpop.f32.mrb[0].mxu0
    %v1080 = vadd.f32 %v765, %v1079
    %v1081 = vpop.f32.mrb[0].mxu0
    %1082 = vmatprep.mubr.f32.mxu0 0.0
    %1083 = vmatmul.mubr.f32.gmra.mrb[0].mxu0 %v861
    %v1084 = vpop.f32.mrb[0].mxu0
    %v1085 = vadd.f32 %v765, %v1084
    %v1086 = vpop.f32.mrb[0].mxu0
    %1087 = vdwg.mxu0
    %v1088 = vmax.f32 %v930, 0.0
    %v1089 = vmax.f32 %v935, 0.0
    %v1090 = vmax.f32 %v940, 0.0
    %v1091 = vmax.f32 %v945, 0.0
    %v1092 = vmax.f32 %v950, 0.0
    %v1093 = vmax.f32 %v955, 0.0
    %v1094 = vmax.f32 %v960, 0.0
    %v1095 = vmax.f32 %v965, 0.0
    %v1096 = vmax.f32 %v970, 0.0
    %v1097 = vmax.f32 %v975, 0.0
    %v1098 = vmax.f32 %v980, 0.0
    %v1099 = vmax.f32 %v985, 0.0
    %v1100 = vmax.f32 %v990, 0.0
    %v1101 = vmax.f32 %v995, 0.0
    %v1102 = vmax.f32 %v1000, 0.0
    %v1103 = vmax.f32 %v1005, 0.0
    %v1104 = vmax.f32 %v1010, 0.0
    %v1105 = vmax.f32 %v1015, 0.0
    %v1106 = vmax.f32 %v1020, 0.0
    %v1107 = vmax.f32 %v1025, 0.0
    %v1108 = vmax.f32 %v1030, 0.0
    %v1109 = vmax.f32 %v1035, 0.0
    %v1110 = vmax.f32 %v1040, 0.0
    %v1111 = vmax.f32 %v1045, 0.0
    %v1112 = vmax.f32 %v1050, 0.0
    %v1113 = vmax.f32 %v1055, 0.0
    %v1114 = vmax.f32 %v1060, 0.0
    %v1115 = vmax.f32 %v1065, 0.0
    %v1116 = vmax.f32 %v1070, 0.0
    %v1117 = vmax.f32 %v1075, 0.0
    %v1118 = vmax.f32 %v1080, 0.0
    %v1119 = vmax.f32 %v1085, 0.0
    %v1122 = vcombine.high %v393, %v393
    %v1124 = vunpack.c.l.s4 1966171168
    %v1125 = vunpack.c.0.s8 %v1124
    %v1126 = vlaneseq
    %v1127 = vshrl.u32 %v1126, 7
    %v1128 = vsub.s32 %v1125, %v1127
    %v1129 = vrot.slane %v393, %v1128
    %v1131 = vunpack.c.l.s4 1966171168
    %v1132 = vunpack.c.0.s8 %v1131
    %v1133 = vlaneseq
    %v1134 = vshrl.u32 %v1133, 7
    %v1135 = vsub.s32 %v1132, %v1134
    %v1136 = vrot.slane %v1122, %v1135
    %v1137 = vcombine.high %v1129, %v1129
    %v1138 = vcombine.high %v1136, %v1136
    %v1140 = vunpack.c.l.s4 1966171168
    %v1141 = vunpack.c.0.s8 %v1140
    %v1142 = vlaneseq
    %v1143 = vshrl.u32 %v1142, 7
    %v1144 = vsub.s32 %v1141, %v1143
    %v1145 = vrot.slane %v1129, %v1144
    %v1147 = vunpack.c.l.s4 1966171168
    %v1148 = vunpack.c.0.s8 %v1147
    %v1149 = vlaneseq
    %v1150 = vshrl.u32 %v1149, 7
    %v1151 = vsub.s32 %v1148, %v1150
    %v1152 = vrot.slane %v1136, %v1151
    %v1154 = vunpack.c.l.s4 1966171168
    %v1155 = vunpack.c.0.s8 %v1154
    %v1156 = vlaneseq
    %v1157 = vshrl.u32 %v1156, 7
    %v1158 = vsub.s32 %v1155, %v1157
    %v1159 = vrot.slane %v1137, %v1158
    %v1161 = vunpack.c.l.s4 1966171168
    %v1162 = vunpack.c.0.s8 %v1161
    %v1163 = vlaneseq
    %v1164 = vshrl.u32 %v1163, 7
    %v1165 = vsub.s32 %v1162, %v1164
    %v1166 = vrot.slane %v1138, %v1165
    %v1167 = vcombine.high %v1145, %v1145
    %v1168 = vcombine.high %v1152, %v1152
    %v1169 = vcombine.high %v1159, %v1159
    %v1170 = vcombine.high %v1166, %v1166
    %v1171 = vcombine.high %v398, %v398
    %v1173 = vunpack.c.l.s4 1966171168
    %v1174 = vunpack.c.0.s8 %v1173
    %v1175 = vlaneseq
    %v1176 = vshrl.u32 %v1175, 7
    %v1177 = vsub.s32 %v1174, %v1176
    %v1178 = vrot.slane %v398, %v1177
    %v1180 = vunpack.c.l.s4 1966171168
    %v1181 = vunpack.c.0.s8 %v1180
    %v1182 = vlaneseq
    %v1183 = vshrl.u32 %v1182, 7
    %v1184 = vsub.s32 %v1181, %v1183
    %v1185 = vrot.slane %v1171, %v1184
    %v1186 = vcombine.high %v1178, %v1178
    %v1187 = vcombine.high %v1185, %v1185
    %v1189 = vunpack.c.l.s4 1966171168
    %v1190 = vunpack.c.0.s8 %v1189
    %v1191 = vlaneseq
    %v1192 = vshrl.u32 %v1191, 7
    %v1193 = vsub.s32 %v1190, %v1192
    %v1194 = vrot.slane %v1178, %v1193
    %v1196 = vunpack.c.l.s4 1966171168
    %v1197 = vunpack.c.0.s8 %v1196
    %v1198 = vlaneseq
    %v1199 = vshrl.u32 %v1198, 7
    %v1200 = vsub.s32 %v1197, %v1199
    %v1201 = vrot.slane %v1185, %v1200
    %v1203 = vunpack.c.l.s4 1966171168
    %v1204 = vunpack.c.0.s8 %v1203
    %v1205 = vlaneseq
    %v1206 = vshrl.u32 %v1205, 7
    %v1207 = vsub.s32 %v1204, %v1206
    %v1208 = vrot.slane %v1186, %v1207
    %v1210 = vunpack.c.l.s4 1966171168
    %v1211 = vunpack.c.0.s8 %v1210
    %v1212 = vlaneseq
    %v1213 = vshrl.u32 %v1212, 7
    %v1214 = vsub.s32 %v1211, %v1213
    %v1215 = vrot.slane %v1187, %v1214
    %v1216 = vcombine.high %v1194, %v1194
    %v1217 = vcombine.high %v1201, %v1201
    %v1218 = vcombine.high %v1208, %v1208
    %v1219 = vcombine.high %v1215, %v1215
    %v1220 = vlaneseq
    %v1221 = vshrl.u32 %v1220, 7
    %v1222 = vsub.s32 0, %v1221
    %v1223 = vrot.slane %v1145, %v1222
    %v1224 = vlaneseq
    %v1225 = vshrl.u32 %v1224, 7
    %v1226 = vsub.s32 0, %v1225
    %v1227 = vrot.slane %v1159, %v1226
    %v1228 = vlaneseq
    %v1229 = vshrl.u32 %v1228, 7
    %v1230 = vsub.s32 0, %v1229
    %v1231 = vrot.slane %v1167, %v1230
    %v1232 = vlaneseq
    %v1233 = vshrl.u32 %v1232, 7
    %v1234 = vsub.s32 0, %v1233
    %v1235 = vrot.slane %v1169, %v1234
    %v1236 = vlaneseq
    %v1237 = vshrl.u32 %v1236, 7
    %v1238 = vsub.s32 0, %v1237
    %v1239 = vrot.slane %v1152, %v1238
    %v1240 = vlaneseq
    %v1241 = vshrl.u32 %v1240, 7
    %v1242 = vsub.s32 0, %v1241
    %v1243 = vrot.slane %v1166, %v1242
    %v1244 = vlaneseq
    %v1245 = vshrl.u32 %v1244, 7
    %v1246 = vsub.s32 0, %v1245
    %v1247 = vrot.slane %v1168, %v1246
    %v1248 = vlaneseq
    %v1249 = vshrl.u32 %v1248, 7
    %v1250 = vsub.s32 0, %v1249
    %v1251 = vrot.slane %v1170, %v1250
    %v1252 = vlaneseq
    %v1253 = vshrl.u32 %v1252, 7
    %v1254 = vsub.s32 0, %v1253
    %v1255 = vrot.slane %v1194, %v1254
    %v1256 = vlaneseq
    %v1257 = vshrl.u32 %v1256, 7
    %v1258 = vsub.s32 0, %v1257
    %v1259 = vrot.slane %v1208, %v1258
    %v1260 = vlaneseq
    %v1261 = vshrl.u32 %v1260, 7
    %v1262 = vsub.s32 0, %v1261
    %v1263 = vrot.slane %v1216, %v1262
    %v1264 = vlaneseq
    %v1265 = vshrl.u32 %v1264, 7
    %v1266 = vsub.s32 0, %v1265
    %v1267 = vrot.slane %v1218, %v1266
    %v1268 = vlaneseq
    %v1269 = vshrl.u32 %v1268, 7
    %v1270 = vsub.s32 0, %v1269
    %v1271 = vrot.slane %v1201, %v1270
    %v1272 = vlaneseq
    %v1273 = vshrl.u32 %v1272, 7
    %v1274 = vsub.s32 0, %v1273
    %v1275 = vrot.slane %v1215, %v1274
    %v1276 = vlaneseq
    %v1277 = vshrl.u32 %v1276, 7
    %v1278 = vsub.s32 0, %v1277
    %v1279 = vrot.slane %v1217, %v1278
    %v1280 = vlaneseq
    %v1281 = vshrl.u32 %v1280, 7
    %v1282 = vsub.s32 0, %v1281
    %v1283 = vrot.slane %v1219, %v1282
    %v1300 = vsub.f32 %v1223, %v318
    %v1301 = vsub.f32 %v1223, %v323
    %v1302 = vsub.f32 %v1227, %v318
    %v1303 = vsub.f32 %v1227, %v323
    %v1304 = vsub.f32 %v1231, %v318
    %v1305 = vsub.f32 %v1231, %v323
    %v1306 = vsub.f32 %v1235, %v318
    %v1307 = vsub.f32 %v1235, %v323
    %v1308 = vsub.f32 %v1239, %v318
    %v1309 = vsub.f32 %v1239, %v323
    %v1310 = vsub.f32 %v1243, %v318
    %v1311 = vsub.f32 %v1243, %v323
    %v1312 = vsub.f32 %v1247, %v318
    %v1313 = vsub.f32 %v1247, %v323
    %v1314 = vsub.f32 %v1251, %v318
    %v1315 = vsub.f32 %v1251, %v323
    %v1316 = vsub.f32 %v1255, %v318
    %v1317 = vsub.f32 %v1255, %v323
    %v1318 = vsub.f32 %v1259, %v318
    %v1319 = vsub.f32 %v1259, %v323
    %v1320 = vsub.f32 %v1263, %v318
    %v1321 = vsub.f32 %v1263, %v323
    %v1322 = vsub.f32 %v1267, %v318
    %v1323 = vsub.f32 %v1267, %v323
    %v1324 = vsub.f32 %v1271, %v318
    %v1325 = vsub.f32 %v1271, %v323
    %v1326 = vsub.f32 %v1275, %v318
    %v1327 = vsub.f32 %v1275, %v323
    %v1328 = vsub.f32 %v1279, %v318
    %v1329 = vsub.f32 %v1279, %v323
    %v1330 = vsub.f32 %v1283, %v318
    %v1331 = vsub.f32 %v1283, %v323
    %v1332 = vadd.f32 %v1300, %v1088
    %v1333 = vadd.f32 %v1301, %v1089
    %v1334 = vadd.f32 %v1302, %v1090
    %v1335 = vadd.f32 %v1303, %v1091
    %v1336 = vadd.f32 %v1304, %v1092
    %v1337 = vadd.f32 %v1305, %v1093
    %v1338 = vadd.f32 %v1306, %v1094
    %v1339 = vadd.f32 %v1307, %v1095
    %v1340 = vadd.f32 %v1308, %v1096
    %v1341 = vadd.f32 %v1309, %v1097
    %v1342 = vadd.f32 %v1310, %v1098
    %v1343 = vadd.f32 %v1311, %v1099
    %v1344 = vadd.f32 %v1312, %v1100
    %v1345 = vadd.f32 %v1313, %v1101
    %v1346 = vadd.f32 %v1314, %v1102
    %v1347 = vadd.f32 %v1315, %v1103
    %v1348 = vadd.f32 %v1316, %v1104
    %v1349 = vadd.f32 %v1317, %v1105
    %v1350 = vadd.f32 %v1318, %v1106
    %v1351 = vadd.f32 %v1319, %v1107
    %v1352 = vadd.f32 %v1320, %v1108
    %v1353 = vadd.f32 %v1321, %v1109
    %v1354 = vadd.f32 %v1322, %v1110
    %v1355 = vadd.f32 %v1323, %v1111
    %v1356 = vadd.f32 %v1324, %v1112
    %v1357 = vadd.f32 %v1325, %v1113
    %v1358 = vadd.f32 %v1326, %v1114
    %v1359 = vadd.f32 %v1327, %v1115
    %v1360 = vadd.f32 %v1328, %v1116
    %v1361 = vadd.f32 %v1329, %v1117
    %v1362 = vadd.f32 %v1330, %v1118
    %v1363 = vadd.f32 %v1331, %v1119
    %v1364 = vlaneseq
    %v1365 = vshrl.u32 %v1364, 7
    %v1366 = vsub.s32 0, %v1365
    %v1367 = vrot.slane %v68, %v1366
    %v1369 = vsel %vm85, %v1332, 0
    %v1372 = vsel %vm85, %v1333, 0
    %v1375 = vsel %vm85, %v1334, 0
    %v1378 = vsel %vm85, %v1335, 0
    %v1381 = vsel %vm85, %v1336, 0
    %v1384 = vsel %vm85, %v1337, 0
    %v1387 = vsel %vm85, %v1338, 0
    %v1390 = vsel %vm85, %v1339, 0
    %v1393 = vsel %vm85, %v1340, 0
    %v1396 = vsel %vm85, %v1341, 0
    %v1399 = vsel %vm85, %v1342, 0
    %v1402 = vsel %vm85, %v1343, 0
    %v1405 = vsel %vm85, %v1344, 0
    %v1408 = vsel %vm85, %v1345, 0
    %v1411 = vsel %vm85, %v1346, 0
    %v1414 = vsel %vm85, %v1347, 0
    %v1417 = vsel %vm85, %v1348, 0
    %v1420 = vsel %vm85, %v1349, 0
    %v1423 = vsel %vm85, %v1350, 0
    %v1426 = vsel %vm85, %v1351, 0
    %v1429 = vsel %vm85, %v1352, 0
    %v1432 = vsel %vm85, %v1353, 0
    %v1435 = vsel %vm85, %v1354, 0
    %v1438 = vsel %vm85, %v1355, 0
    %v1441 = vsel %vm85, %v1356, 0
    %v1444 = vsel %vm85, %v1357, 0
    %v1447 = vsel %vm85, %v1358, 0
    %v1450 = vsel %vm85, %v1359, 0
    %v1453 = vsel %vm85, %v1360, 0
    %v1456 = vsel %vm85, %v1361, 0
    %v1459 = vsel %vm85, %v1362, 0
    %v1462 = vsel %vm85, %v1363, 0
    %1464 = vmatprep.subr.mxu0 0.0
    %1465 = vmatpush1.msra.mxu0 %v66
    %1466 = vmatprep.subr.mxu0 0.0
    %1467 = vmatpush1.msra.mxu0 %v67
    %1468 = vmatprep.subr.mxu0 0.0
    %1469 = vmatpush1.msra.mxu0 0.0
    %1470 = vmatprep.subr.mxu0 0.0
    %1471 = vmatpush1.msra.mxu0 0.0
    %1472 = vmatprep.subr.mxu0 0.0
    %1473 = vmatpush1.msra.mxu0 0.0
    %1474 = vmatprep.subr.mxu0 0.0
    %1475 = vmatpush1.msra.mxu0 0.0
    %1476 = vmatprep.subr.mxu0 0.0
    %1477 = vmatpush1.msra.mxu0 0.0
    %1478 = vmatprep.subr.mxu0 0.0
    %1479 = vmatpush1.msra.mxu0 0.0
    %1480 = vmatprep.subr.mxu0 0.0
    %1481 = vmatpush1.msra.mxu0 0.0
    %1482 = vmatprep.subr.mxu0 0.0
    %1483 = vmatpush1.msra.mxu0 0.0
    %1484 = vmatprep.subr.mxu0 0.0
    %1485 = vmatpush1.msra.mxu0 0.0
    %1486 = vmatprep.subr.mxu0 0.0
    %1487 = vmatpush1.msra.mxu0 0.0
    %1488 = vmatprep.subr.mxu0 0.0
    %1489 = vmatpush1.msra.mxu0 0.0
    %1490 = vmatprep.subr.mxu0 0.0
    %1491 = vmatpush1.msra.mxu0 0.0
    %1492 = vmatprep.subr.mxu0 0.0
    %1493 = vmatpush1.msra.mxu0 0.0
    %1494 = vmatprep.subr.mxu0 0.0
    %1495 = vmatpush1.msra.mxu0 0.0
    %1496 = vmatprep.subr.mxu0 0.0
    %1497 = vmatpush1.msra.mxu0 0.0
    %1498 = vmatprep.subr.mxu0 0.0
    %1499 = vmatpush1.msra.mxu0 0.0
    %1500 = vmatprep.subr.mxu0 0.0
    %1501 = vmatpush1.msra.mxu0 0.0
    %1502 = vmatprep.subr.mxu0 0.0
    %1503 = vmatpush1.msra.mxu0 0.0
    %1504 = vmatprep.subr.mxu0 0.0
    %1505 = vmatpush1.msra.mxu0 0.0
    %1506 = vmatprep.subr.mxu0 0.0
    %1507 = vmatpush1.msra.mxu0 0.0
    %1508 = vmatprep.subr.mxu0 0.0
    %1509 = vmatpush1.msra.mxu0 0.0
    %1510 = vmatprep.subr.mxu0 0.0
    %1511 = vmatpush1.msra.mxu0 0.0
    %1512 = vmatprep.subr.mxu0 0.0
    %1513 = vmatpush1.msra.mxu0 0.0
    %1514 = vmatprep.subr.mxu0 0.0
    %1515 = vmatpush1.msra.mxu0 0.0
    %1516 = vmatprep.subr.mxu0 0.0
    %1517 = vmatpush1.msra.mxu0 0.0
    %1518 = vmatprep.subr.mxu0 0.0
    %1519 = vmatpush1.msra.mxu0 0.0
    %1520 = vmatprep.subr.mxu0 0.0
    %1521 = vmatpush1.msra.mxu0 0.0
    %1522 = vmatprep.subr.mxu0 0.0
    %1523 = vmatpush1.msra.mxu0 0.0
    %1524 = vmatprep.subr.mxu0 0.0
    %1525 = vmatpush1.msra.mxu0 0.0
    %1526 = vmatprep.subr.mxu0 0.0
    %1527 = vmatpush1.msra.mxu0 0.0
    %1528 = vmatprep.mubr.f32.mxu0 0.0
    %1529 = vmatmul.mubr.f32.gmra.mrb[0].mxu0 %v1369
    %v1530 = vpop.f32.mrb[0].mxu0
    %v1531 = vadd.f32 %v1367, %v1530
    %v1532 = vpop.f32.mrb[0].mxu0
    %1533 = vmatprep.mubr.f32.mxu0 0.0
    %1534 = vmatmul.mubr.f32.gmra.mrb[0].mxu0 %v1372
    %v1535 = vpop.f32.mrb[0].mxu0
    %v1536 = vadd.f32 %v1367, %v1535
    %v1537 = vpop.f32.mrb[0].mxu0
    %1538 = vmatprep.mubr.f32.mxu0 0.0
    %1539 = vmatmul.mubr.f32.gmra.mrb[0].mxu0 %v1375
    %v1540 = vpop.f32.mrb[0].mxu0
    %v1541 = vadd.f32 %v1367, %v1540
    %v1542 = vpop.f32.mrb[0].mxu0
    %1543 = vmatprep.mubr.f32.mxu0 0.0
    %1544 = vmatmul.mubr.f32.gmra.mrb[0].mxu0 %v1378
    %v1545 = vpop.f32.mrb[0].mxu0
    %v1546 = vadd.f32 %v1367, %v1545
    %v1547 = vpop.f32.mrb[0].mxu0
    %1548 = vmatprep.mubr.f32.mxu0 0.0
    %1549 = vmatmul.mubr.f32.gmra.mrb[0].mxu0 %v1381
    %v1550 = vpop.f32.mrb[0].mxu0
    %v1551 = vadd.f32 %v1367, %v1550
    %v1552 = vpop.f32.mrb[0].mxu0
    %1553 = vmatprep.mubr.f32.mxu0 0.0
    %1554 = vmatmul.mubr.f32.gmra.mrb[0].mxu0 %v1384
    %v1555 = vpop.f32.mrb[0].mxu0
    %v1556 = vadd.f32 %v1367, %v1555
    %v1557 = vpop.f32.mrb[0].mxu0
    %1558 = vmatprep.mubr.f32.mxu0 0.0
    %1559 = vmatmul.mubr.f32.gmra.mrb[0].mxu0 %v1387
    %v1560 = vpop.f32.mrb[0].mxu0
    %v1561 = vadd.f32 %v1367, %v1560
    %v1562 = vpop.f32.mrb[0].mxu0
    %1563 = vmatprep.mubr.f32.mxu0 0.0
    %1564 = vmatmul.mubr.f32.gmra.mrb[0].mxu0 %v1390
    %v1565 = vpop.f32.mrb[0].mxu0
    %v1566 = vadd.f32 %v1367, %v1565
    %v1567 = vpop.f32.mrb[0].mxu0
    %1568 = vmatprep.mubr.f32.mxu0 0.0
    %1569 = vmatmul.mubr.f32.gmra.mrb[0].mxu0 %v1393
    %v1570 = vpop.f32.mrb[0].mxu0
    %v1571 = vadd.f32 %v1367, %v1570
    %v1572 = vpop.f32.mrb[0].mxu0
    %1573 = vmatprep.mubr.f32.mxu0 0.0
    %1574 = vmatmul.mubr.f32.gmra.mrb[0].mxu0 %v1396
    %v1575 = vpop.f32.mrb[0].mxu0
    %v1576 = vadd.f32 %v1367, %v1575
    %v1577 = vpop.f32.mrb[0].mxu0
    %1578 = vmatprep.mubr.f32.mxu0 0.0
    %1579 = vmatmul.mubr.f32.gmra.mrb[0].mxu0 %v1399
    %v1580 = vpop.f32.mrb[0].mxu0
    %v1581 = vadd.f32 %v1367, %v1580
    %v1582 = vpop.f32.mrb[0].mxu0
    %1583 = vmatprep.mubr.f32.mxu0 0.0
    %1584 = vmatmul.mubr.f32.gmra.mrb[0].mxu0 %v1402
    %v1585 = vpop.f32.mrb[0].mxu0
    %v1586 = vadd.f32 %v1367, %v1585
    %v1587 = vpop.f32.mrb[0].mxu0
    %1588 = vmatprep.mubr.f32.mxu0 0.0
    %1589 = vmatmul.mubr.f32.gmra.mrb[0].mxu0 %v1405
    %v1590 = vpop.f32.mrb[0].mxu0
    %v1591 = vadd.f32 %v1367, %v1590
    %v1592 = vpop.f32.mrb[0].mxu0
    %1593 = vmatprep.mubr.f32.mxu0 0.0
    %1594 = vmatmul.mubr.f32.gmra.mrb[0].mxu0 %v1408
    %v1595 = vpop.f32.mrb[0].mxu0
    %v1596 = vadd.f32 %v1367, %v1595
    %v1597 = vpop.f32.mrb[0].mxu0
    %1598 = vmatprep.mubr.f32.mxu0 0.0
    %1599 = vmatmul.mubr.f32.gmra.mrb[0].mxu0 %v1411
    %v1600 = vpop.f32.mrb[0].mxu0
    %v1601 = vadd.f32 %v1367, %v1600
    %v1602 = vpop.f32.mrb[0].mxu0
    %1603 = vmatprep.mubr.f32.mxu0 0.0
    %1604 = vmatmul.mubr.f32.gmra.mrb[0].mxu0 %v1414
    %v1605 = vpop.f32.mrb[0].mxu0
    %v1606 = vadd.f32 %v1367, %v1605
    %v1607 = vpop.f32.mrb[0].mxu0
    %1608 = vmatprep.mubr.f32.mxu0 0.0
    %1609 = vmatmul.mubr.f32.gmra.mrb[0].mxu0 %v1417
    %v1610 = vpop.f32.mrb[0].mxu0
    %v1611 = vadd.f32 %v1367, %v1610
    %v1612 = vpop.f32.mrb[0].mxu0
    %1613 = vmatprep.mubr.f32.mxu0 0.0
    %1614 = vmatmul.mubr.f32.gmra.mrb[0].mxu0 %v1420
    %v1615 = vpop.f32.mrb[0].mxu0
    %v1616 = vadd.f32 %v1367, %v1615
    %v1617 = vpop.f32.mrb[0].mxu0
    %1618 = vmatprep.mubr.f32.mxu0 0.0
    %1619 = vmatmul.mubr.f32.gmra.mrb[0].mxu0 %v1423
    %v1620 = vpop.f32.mrb[0].mxu0
    %v1621 = vadd.f32 %v1367, %v1620
    %v1622 = vpop.f32.mrb[0].mxu0
    %1623 = vmatprep.mubr.f32.mxu0 0.0
    %1624 = vmatmul.mubr.f32.gmra.mrb[0].mxu0 %v1426
    %v1625 = vpop.f32.mrb[0].mxu0
    %v1626 = vadd.f32 %v1367, %v1625
    %v1627 = vpop.f32.mrb[0].mxu0
    %1628 = vmatprep.mubr.f32.mxu0 0.0
    %1629 = vmatmul.mubr.f32.gmra.mrb[0].mxu0 %v1429
    %v1630 = vpop.f32.mrb[0].mxu0
    %v1631 = vadd.f32 %v1367, %v1630
    %v1632 = vpop.f32.mrb[0].mxu0
    %1633 = vmatprep.mubr.f32.mxu0 0.0
    %1634 = vmatmul.mubr.f32.gmra.mrb[0].mxu0 %v1432
    %v1635 = vpop.f32.mrb[0].mxu0
    %v1636 = vadd.f32 %v1367, %v1635
    %v1637 = vpop.f32.mrb[0].mxu0
    %1638 = vmatprep.mubr.f32.mxu0 0.0
    %1639 = vmatmul.mubr.f32.gmra.mrb[0].mxu0 %v1435
    %v1640 = vpop.f32.mrb[0].mxu0
    %v1641 = vadd.f32 %v1367, %v1640
    %v1642 = vpop.f32.mrb[0].mxu0
    %1643 = vmatprep.mubr.f32.mxu0 0.0
    %1644 = vmatmul.mubr.f32.gmra.mrb[0].mxu0 %v1438
    %v1645 = vpop.f32.mrb[0].mxu0
    %v1646 = vadd.f32 %v1367, %v1645
    %v1647 = vpop.f32.mrb[0].mxu0
    %1648 = vmatprep.mubr.f32.mxu0 0.0
    %1649 = vmatmul.mubr.f32.gmra.mrb[0].mxu0 %v1441
    %v1650 = vpop.f32.mrb[0].mxu0
    %v1651 = vadd.f32 %v1367, %v1650
    %v1652 = vpop.f32.mrb[0].mxu0
    %1653 = vmatprep.mubr.f32.mxu0 0.0
    %1654 = vmatmul.mubr.f32.gmra.mrb[0].mxu0 %v1444
    %v1655 = vpop.f32.mrb[0].mxu0
    %v1656 = vadd.f32 %v1367, %v1655
    %v1657 = vpop.f32.mrb[0].mxu0
    %1658 = vmatprep.mubr.f32.mxu0 0.0
    %1659 = vmatmul.mubr.f32.gmra.mrb[0].mxu0 %v1447
    %v1660 = vpop.f32.mrb[0].mxu0
    %v1661 = vadd.f32 %v1367, %v1660
    %v1662 = vpop.f32.mrb[0].mxu0
    %1663 = vmatprep.mubr.f32.mxu0 0.0
    %1664 = vmatmul.mubr.f32.gmra.mrb[0].mxu0 %v1450
    %v1665 = vpop.f32.mrb[0].mxu0
    %v1666 = vadd.f32 %v1367, %v1665
    %v1667 = vpop.f32.mrb[0].mxu0
    %1668 = vmatprep.mubr.f32.mxu0 0.0
    %1669 = vmatmul.mubr.f32.gmra.mrb[0].mxu0 %v1453
    %v1670 = vpop.f32.mrb[0].mxu0
    %v1671 = vadd.f32 %v1367, %v1670
    %v1672 = vpop.f32.mrb[0].mxu0
    %1673 = vmatprep.mubr.f32.mxu0 0.0
    %1674 = vmatmul.mubr.f32.gmra.mrb[0].mxu0 %v1456
    %v1675 = vpop.f32.mrb[0].mxu0
    %v1676 = vadd.f32 %v1367, %v1675
    %v1677 = vpop.f32.mrb[0].mxu0
    %1678 = vmatprep.mubr.f32.mxu0 0.0
    %1679 = vmatmul.mubr.f32.gmra.mrb[0].mxu0 %v1459
    %v1680 = vpop.f32.mrb[0].mxu0
    %v1681 = vadd.f32 %v1367, %v1680
    %v1682 = vpop.f32.mrb[0].mxu0
    %1683 = vmatprep.mubr.f32.mxu0 0.0
    %1684 = vmatmul.mubr.f32.gmra.mrb[0].mxu0 %v1462
    %v1685 = vpop.f32.mrb[0].mxu0
    %v1686 = vadd.f32 %v1367, %v1685
    %v1687 = vpop.f32.mrb[0].mxu0
    %1688 = vdwg.mxu0
    %v1689 = vmax.f32 %v1531, 0.0
    %v1690 = vmax.f32 %v1536, 0.0
    %v1691 = vmax.f32 %v1541, 0.0
    %v1692 = vmax.f32 %v1546, 0.0
    %v1693 = vmax.f32 %v1551, 0.0
    %v1694 = vmax.f32 %v1556, 0.0
    %v1695 = vmax.f32 %v1561, 0.0
    %v1696 = vmax.f32 %v1566, 0.0
    %v1697 = vmax.f32 %v1571, 0.0
    %v1698 = vmax.f32 %v1576, 0.0
    %v1699 = vmax.f32 %v1581, 0.0
    %v1700 = vmax.f32 %v1586, 0.0
    %v1701 = vmax.f32 %v1591, 0.0
    %v1702 = vmax.f32 %v1596, 0.0
    %v1703 = vmax.f32 %v1601, 0.0
    %v1704 = vmax.f32 %v1606, 0.0
    %v1705 = vmax.f32 %v1611, 0.0
    %v1706 = vmax.f32 %v1616, 0.0
    %v1707 = vmax.f32 %v1621, 0.0
    %v1708 = vmax.f32 %v1626, 0.0
    %v1709 = vmax.f32 %v1631, 0.0
    %v1710 = vmax.f32 %v1636, 0.0
    %v1711 = vmax.f32 %v1641, 0.0
    %v1712 = vmax.f32 %v1646, 0.0
    %v1713 = vmax.f32 %v1651, 0.0
    %v1714 = vmax.f32 %v1656, 0.0
    %v1715 = vmax.f32 %v1661, 0.0
    %v1716 = vmax.f32 %v1666, 0.0
    %v1717 = vmax.f32 %v1671, 0.0
    %v1718 = vmax.f32 %v1676, 0.0
    %v1719 = vmax.f32 %v1681, 0.0
    %v1720 = vmax.f32 %v1686, 0.0
    %v1721 = vlaneseq
    %v1722 = vshrl.u32 %v1721, 7
    %v1723 = vsub.s32 0, %v1722
    %v1724 = vrot.slane %v77, %v1723
    %v1726 = vsel %vm766, %v1689, 0
    %v1729 = vsel %vm766, %v1690, 0
    %v1732 = vsel %vm766, %v1691, 0
    %v1735 = vsel %vm766, %v1692, 0
    %v1738 = vsel %vm766, %v1693, 0
    %v1741 = vsel %vm766, %v1694, 0
    %v1744 = vsel %vm766, %v1695, 0
    %v1747 = vsel %vm766, %v1696, 0
    %v1750 = vsel %vm766, %v1697, 0
    %v1753 = vsel %vm766, %v1698, 0
    %v1756 = vsel %vm766, %v1699, 0
    %v1759 = vsel %vm766, %v1700, 0
    %v1762 = vsel %vm766, %v1701, 0
    %v1765 = vsel %vm766, %v1702, 0
    %v1768 = vsel %vm766, %v1703, 0
    %v1771 = vsel %vm766, %v1704, 0
    %v1774 = vsel %vm766, %v1705, 0
    %v1777 = vsel %vm766, %v1706, 0
    %v1780 = vsel %vm766, %v1707, 0
    %v1783 = vsel %vm766, %v1708, 0
    %v1786 = vsel %vm766, %v1709, 0
    %v1789 = vsel %vm766, %v1710, 0
    %v1792 = vsel %vm766, %v1711, 0
    %v1795 = vsel %vm766, %v1712, 0
    %v1798 = vsel %vm766, %v1713, 0
    %v1801 = vsel %vm766, %v1714, 0
    %v1804 = vsel %vm766, %v1715, 0
    %v1807 = vsel %vm766, %v1716, 0
    %v1810 = vsel %vm766, %v1717, 0
    %v1813 = vsel %vm766, %v1718, 0
    %v1816 = vsel %vm766, %v1719, 0
    %v1819 = vsel %vm766, %v1720, 0
    %1821 = vmatprep.subr.mxu0 0.0
    %1822 = vmatpush1.msra.mxu0 %v69
    %1823 = vmatprep.subr.mxu0 0.0
    %1824 = vmatpush1.msra.mxu0 %v70
    %1825 = vmatprep.subr.mxu0 0.0
    %1826 = vmatpush1.msra.mxu0 %v71
    %1827 = vmatprep.subr.mxu0 0.0
    %1828 = vmatpush1.msra.mxu0 %v72
    %1829 = vmatprep.subr.mxu0 0.0
    %1830 = vmatpush1.msra.mxu0 %v73
    %1831 = vmatprep.subr.mxu0 0.0
    %1832 = vmatpush1.msra.mxu0 %v74
    %1833 = vmatprep.subr.mxu0 0.0
    %1834 = vmatpush1.msra.mxu0 %v75
    %1835 = vmatprep.subr.mxu0 0.0
    %1836 = vmatpush1.msra.mxu0 %v76
    %1837 = vmatprep.subr.mxu0 0.0
    %1838 = vmatpush1.msra.mxu0 0.0
    %1839 = vmatprep.subr.mxu0 0.0
    %1840 = vmatpush1.msra.mxu0 0.0
    %1841 = vmatprep.subr.mxu0 0.0
    %1842 = vmatpush1.msra.mxu0 0.0
    %1843 = vmatprep.subr.mxu0 0.0
    %1844 = vmatpush1.msra.mxu0 0.0
    %1845 = vmatprep.subr.mxu0 0.0
    %1846 = vmatpush1.msra.mxu0 0.0
    %1847 = vmatprep.subr.mxu0 0.0
    %1848 = vmatpush1.msra.mxu0 0.0
    %1849 = vmatprep.subr.mxu0 0.0
    %1850 = vmatpush1.msra.mxu0 0.0
    %1851 = vmatprep.subr.mxu0 0.0
    %1852 = vmatpush1.msra.mxu0 0.0
    %1853 = vmatprep.subr.mxu0 0.0
    %1854 = vmatpush1.msra.mxu0 0.0
    %1855 = vmatprep.subr.mxu0 0.0
    %1856 = vmatpush1.msra.mxu0 0.0
    %1857 = vmatprep.subr.mxu0 0.0
    %1858 = vmatpush1.msra.mxu0 0.0
    %1859 = vmatprep.subr.mxu0 0.0
    %1860 = vmatpush1.msra.mxu0 0.0
    %1861 = vmatprep.subr.mxu0 0.0
    %1862 = vmatpush1.msra.mxu0 0.0
    %1863 = vmatprep.subr.mxu0 0.0
    %1864 = vmatpush1.msra.mxu0 0.0
    %1865 = vmatprep.subr.mxu0 0.0
    %1866 = vmatpush1.msra.mxu0 0.0
    %1867 = vmatprep.subr.mxu0 0.0
    %1868 = vmatpush1.msra.mxu0 0.0
    %1869 = vmatprep.subr.mxu0 0.0
    %1870 = vmatpush1.msra.mxu0 0.0
    %1871 = vmatprep.subr.mxu0 0.0
    %1872 = vmatpush1.msra.mxu0 0.0
    %1873 = vmatprep.subr.mxu0 0.0
    %1874 = vmatpush1.msra.mxu0 0.0
    %1875 = vmatprep.subr.mxu0 0.0
    %1876 = vmatpush1.msra.mxu0 0.0
    %1877 = vmatprep.subr.mxu0 0.0
    %1878 = vmatpush1.msra.mxu0 0.0
    %1879 = vmatprep.subr.mxu0 0.0
    %1880 = vmatpush1.msra.mxu0 0.0
    %1881 = vmatprep.subr.mxu0 0.0
    %1882 = vmatpush1.msra.mxu0 0.0
    %1883 = vmatprep.subr.mxu0 0.0
    %1884 = vmatpush1.msra.mxu0 0.0
    %1885 = vmatprep.mubr.f32.mxu0 0.0
    %1886 = vmatmul.mubr.f32.gmra.mrb[0].mxu0 %v1726
    %v1887 = vpop.f32.mrb[0].mxu0
    %v1888 = vadd.f32 %v1724, %v1887
    %v1889 = vpop.f32.mrb[0].mxu0
    %1890 = vmatprep.mubr.f32.mxu0 0.0
    %1891 = vmatmul.mubr.f32.gmra.mrb[0].mxu0 %v1729
    %v1892 = vpop.f32.mrb[0].mxu0
    %v1893 = vadd.f32 %v1724, %v1892
    %v1894 = vpop.f32.mrb[0].mxu0
    %1895 = vmatprep.mubr.f32.mxu0 0.0
    %1896 = vmatmul.mubr.f32.gmra.mrb[0].mxu0 %v1732
    %v1897 = vpop.f32.mrb[0].mxu0
    %v1898 = vadd.f32 %v1724, %v1897
    %v1899 = vpop.f32.mrb[0].mxu0
    %1900 = vmatprep.mubr.f32.mxu0 0.0
    %1901 = vmatmul.mubr.f32.gmra.mrb[0].mxu0 %v1735
    %v1902 = vpop.f32.mrb[0].mxu0
    %v1903 = vadd.f32 %v1724, %v1902
    %v1904 = vpop.f32.mrb[0].mxu0
    %1905 = vmatprep.mubr.f32.mxu0 0.0
    %1906 = vmatmul.mubr.f32.gmra.mrb[0].mxu0 %v1738
    %v1907 = vpop.f32.mrb[0].mxu0
    %v1908 = vadd.f32 %v1724, %v1907
    %v1909 = vpop.f32.mrb[0].mxu0
    %1910 = vmatprep.mubr.f32.mxu0 0.0
    %1911 = vmatmul.mubr.f32.gmra.mrb[0].mxu0 %v1741
    %v1912 = vpop.f32.mrb[0].mxu0
    %v1913 = vadd.f32 %v1724, %v1912
    %v1914 = vpop.f32.mrb[0].mxu0
    %1915 = vmatprep.mubr.f32.mxu0 0.0
    %1916 = vmatmul.mubr.f32.gmra.mrb[0].mxu0 %v1744
    %v1917 = vpop.f32.mrb[0].mxu0
    %v1918 = vadd.f32 %v1724, %v1917
    %v1919 = vpop.f32.mrb[0].mxu0
    %1920 = vmatprep.mubr.f32.mxu0 0.0
    %1921 = vmatmul.mubr.f32.gmra.mrb[0].mxu0 %v1747
    %v1922 = vpop.f32.mrb[0].mxu0
    %v1923 = vadd.f32 %v1724, %v1922
    %v1924 = vpop.f32.mrb[0].mxu0
    %1925 = vmatprep.mubr.f32.mxu0 0.0
    %1926 = vmatmul.mubr.f32.gmra.mrb[0].mxu0 %v1750
    %v1927 = vpop.f32.mrb[0].mxu0
    %v1928 = vadd.f32 %v1724, %v1927
    %v1929 = vpop.f32.mrb[0].mxu0
    %1930 = vmatprep.mubr.f32.mxu0 0.0
    %1931 = vmatmul.mubr.f32.gmra.mrb[0].mxu0 %v1753
    %v1932 = vpop.f32.mrb[0].mxu0
    %v1933 = vadd.f32 %v1724, %v1932
    %v1934 = vpop.f32.mrb[0].mxu0
    %1935 = vmatprep.mubr.f32.mxu0 0.0
    %1936 = vmatmul.mubr.f32.gmra.mrb[0].mxu0 %v1756
    %v1937 = vpop.f32.mrb[0].mxu0
    %v1938 = vadd.f32 %v1724, %v1937
    %v1939 = vpop.f32.mrb[0].mxu0
    %1940 = vmatprep.mubr.f32.mxu0 0.0
    %1941 = vmatmul.mubr.f32.gmra.mrb[0].mxu0 %v1759
    %v1942 = vpop.f32.mrb[0].mxu0
    %v1943 = vadd.f32 %v1724, %v1942
    %v1944 = vpop.f32.mrb[0].mxu0
    %1945 = vmatprep.mubr.f32.mxu0 0.0
    %1946 = vmatmul.mubr.f32.gmra.mrb[0].mxu0 %v1762
    %v1947 = vpop.f32.mrb[0].mxu0
    %v1948 = vadd.f32 %v1724, %v1947
    %v1949 = vpop.f32.mrb[0].mxu0
    %1950 = vmatprep.mubr.f32.mxu0 0.0
    %1951 = vmatmul.mubr.f32.gmra.mrb[0].mxu0 %v1765
    %v1952 = vpop.f32.mrb[0].mxu0
    %v1953 = vadd.f32 %v1724, %v1952
    %v1954 = vpop.f32.mrb[0].mxu0
    %1955 = vmatprep.mubr.f32.mxu0 0.0
    %1956 = vmatmul.mubr.f32.gmra.mrb[0].mxu0 %v1768
    %v1957 = vpop.f32.mrb[0].mxu0
    %v1958 = vadd.f32 %v1724, %v1957
    %v1959 = vpop.f32.mrb[0].mxu0
    %1960 = vmatprep.mubr.f32.mxu0 0.0
    %1961 = vmatmul.mubr.f32.gmra.mrb[0].mxu0 %v1771
    %v1962 = vpop.f32.mrb[0].mxu0
    %v1963 = vadd.f32 %v1724, %v1962
    %v1964 = vpop.f32.mrb[0].mxu0
    %1965 = vmatprep.mubr.f32.mxu0 0.0
    %1966 = vmatmul.mubr.f32.gmra.mrb[0].mxu0 %v1774
    %v1967 = vpop.f32.mrb[0].mxu0
    %v1968 = vadd.f32 %v1724, %v1967
    %v1969 = vpop.f32.mrb[0].mxu0
    %1970 = vmatprep.mubr.f32.mxu0 0.0
    %1971 = vmatmul.mubr.f32.gmra.mrb[0].mxu0 %v1777
    %v1972 = vpop.f32.mrb[0].mxu0
    %v1973 = vadd.f32 %v1724, %v1972
    %v1974 = vpop.f32.mrb[0].mxu0
    %1975 = vmatprep.mubr.f32.mxu0 0.0
    %1976 = vmatmul.mubr.f32.gmra.mrb[0].mxu0 %v1780
    %v1977 = vpop.f32.mrb[0].mxu0
    %v1978 = vadd.f32 %v1724, %v1977
    %v1979 = vpop.f32.mrb[0].mxu0
    %1980 = vmatprep.mubr.f32.mxu0 0.0
    %1981 = vmatmul.mubr.f32.gmra.mrb[0].mxu0 %v1783
    %v1982 = vpop.f32.mrb[0].mxu0
    %v1983 = vadd.f32 %v1724, %v1982
    %v1984 = vpop.f32.mrb[0].mxu0
    %1985 = vmatprep.mubr.f32.mxu0 0.0
    %1986 = vmatmul.mubr.f32.gmra.mrb[0].mxu0 %v1786
    %v1987 = vpop.f32.mrb[0].mxu0
    %v1988 = vadd.f32 %v1724, %v1987
    %v1989 = vpop.f32.mrb[0].mxu0
    %1990 = vmatprep.mubr.f32.mxu0 0.0
    %1991 = vmatmul.mubr.f32.gmra.mrb[0].mxu0 %v1789
    %v1992 = vpop.f32.mrb[0].mxu0
    %v1993 = vadd.f32 %v1724, %v1992
    %v1994 = vpop.f32.mrb[0].mxu0
    %1995 = vmatprep.mubr.f32.mxu0 0.0
    %1996 = vmatmul.mubr.f32.gmra.mrb[0].mxu0 %v1792
    %v1997 = vpop.f32.mrb[0].mxu0
    %v1998 = vadd.f32 %v1724, %v1997
    %v1999 = vpop.f32.mrb[0].mxu0
    %2000 = vmatprep.mubr.f32.mxu0 0.0
    %2001 = vmatmul.mubr.f32.gmra.mrb[0].mxu0 %v1795
    %v2002 = vpop.f32.mrb[0].mxu0
    %v2003 = vadd.f32 %v1724, %v2002
    %v2004 = vpop.f32.mrb[0].mxu0
    %2005 = vmatprep.mubr.f32.mxu0 0.0
    %2006 = vmatmul.mubr.f32.gmra.mrb[0].mxu0 %v1798
    %v2007 = vpop.f32.mrb[0].mxu0
    %v2008 = vadd.f32 %v1724, %v2007
    %v2009 = vpop.f32.mrb[0].mxu0
    %2010 = vmatprep.mubr.f32.mxu0 0.0
    %2011 = vmatmul.mubr.f32.gmra.mrb[0].mxu0 %v1801
    %v2012 = vpop.f32.mrb[0].mxu0
    %v2013 = vadd.f32 %v1724, %v2012
    %v2014 = vpop.f32.mrb[0].mxu0
    %2015 = vmatprep.mubr.f32.mxu0 0.0
    %2016 = vmatmul.mubr.f32.gmra.mrb[0].mxu0 %v1804
    %v2017 = vpop.f32.mrb[0].mxu0
    %v2018 = vadd.f32 %v1724, %v2017
    %v2019 = vpop.f32.mrb[0].mxu0
    %2020 = vmatprep.mubr.f32.mxu0 0.0
    %2021 = vmatmul.mubr.f32.gmra.mrb[0].mxu0 %v1807
    %v2022 = vpop.f32.mrb[0].mxu0
    %v2023 = vadd.f32 %v1724, %v2022
    %v2024 = vpop.f32.mrb[0].mxu0
    %2025 = vmatprep.mubr.f32.mxu0 0.0
    %2026 = vmatmul.mubr.f32.gmra.mrb[0].mxu0 %v1810
    %v2027 = vpop.f32.mrb[0].mxu0
    %v2028 = vadd.f32 %v1724, %v2027
    %v2029 = vpop.f32.mrb[0].mxu0
    %2030 = vmatprep.mubr.f32.mxu0 0.0
    %2031 = vmatmul.mubr.f32.gmra.mrb[0].mxu0 %v1813
    %v2032 = vpop.f32.mrb[0].mxu0
    %v2033 = vadd.f32 %v1724, %v2032
    %v2034 = vpop.f32.mrb[0].mxu0
    %2035 = vmatprep.mubr.f32.mxu0 0.0
    %2036 = vmatmul.mubr.f32.gmra.mrb[0].mxu0 %v1816
    %v2037 = vpop.f32.mrb[0].mxu0
    %v2038 = vadd.f32 %v1724, %v2037
    %v2039 = vpop.f32.mrb[0].mxu0
    %2040 = vmatprep.mubr.f32.mxu0 0.0
    %2041 = vmatmul.mubr.f32.gmra.mrb[0].mxu0 %v1819
    %v2042 = vpop.f32.mrb[0].mxu0
    %v2043 = vadd.f32 %v1724, %v2042
    %v2044 = vpop.f32.mrb[0].mxu0
    %2045 = vdwg.mxu0
    %v2046 = vmax.f32 %v1888, 0.0
    %v2047 = vmax.f32 %v1893, 0.0
    %v2048 = vmax.f32 %v1898, 0.0
    %v2049 = vmax.f32 %v1903, 0.0
    %v2050 = vmax.f32 %v1908, 0.0
    %v2051 = vmax.f32 %v1913, 0.0
    %v2052 = vmax.f32 %v1918, 0.0
    %v2053 = vmax.f32 %v1923, 0.0
    %v2054 = vmax.f32 %v1928, 0.0
    %v2055 = vmax.f32 %v1933, 0.0
    %v2056 = vmax.f32 %v1938, 0.0
    %v2057 = vmax.f32 %v1943, 0.0
    %v2058 = vmax.f32 %v1948, 0.0
    %v2059 = vmax.f32 %v1953, 0.0
    %v2060 = vmax.f32 %v1958, 0.0
    %v2061 = vmax.f32 %v1963, 0.0
    %v2062 = vmax.f32 %v1968, 0.0
    %v2063 = vmax.f32 %v1973, 0.0
    %v2064 = vmax.f32 %v1978, 0.0
    %v2065 = vmax.f32 %v1983, 0.0
    %v2066 = vmax.f32 %v1988, 0.0
    %v2067 = vmax.f32 %v1993, 0.0
    %v2068 = vmax.f32 %v1998, 0.0
    %v2069 = vmax.f32 %v2003, 0.0
    %v2070 = vmax.f32 %v2008, 0.0
    %v2071 = vmax.f32 %v2013, 0.0
    %v2072 = vmax.f32 %v2018, 0.0
    %v2073 = vmax.f32 %v2023, 0.0
    %v2074 = vmax.f32 %v2028, 0.0
    %v2075 = vmax.f32 %v2033, 0.0
    %v2076 = vmax.f32 %v2038, 0.0
    %v2077 = vmax.f32 %v2043, 0.0
    %v2078 = vadd.f32 %v2046, %v16
    %v2079 = vadd.f32 %v2047, %v17
    %v2080 = vadd.f32 %v2048, %v18
    %v2081 = vadd.f32 %v2049, %v19
    %v2082 = vadd.f32 %v2050, %v20
    %v2083 = vadd.f32 %v2051, %v21
    %v2084 = vadd.f32 %v2052, %v22
    %v2085 = vadd.f32 %v2053, %v23
    %v2086 = vadd.f32 %v2054, %v24
    %v2087 = vadd.f32 %v2055, %v25
    %v2088 = vadd.f32 %v2056, %v26
    %v2089 = vadd.f32 %v2057, %v27
    %v2090 = vadd.f32 %v2058, %v28
    %v2091 = vadd.f32 %v2059, %v29
    %v2092 = vadd.f32 %v2060, %v30
    %v2093 = vadd.f32 %v2061, %v31
    %v2094 = vadd.f32 %v2062, %v32
    %v2095 = vadd.f32 %v2063, %v33
    %v2096 = vadd.f32 %v2064, %v34
    %v2097 = vadd.f32 %v2065, %v35
    %v2098 = vadd.f32 %v2066, %v36
    %v2099 = vadd.f32 %v2067, %v37
    %v2100 = vadd.f32 %v2068, %v38
    %v2101 = vadd.f32 %v2069, %v39
    %v2102 = vadd.f32 %v2070, %v40
    %v2103 = vadd.f32 %v2071, %v41
    %v2104 = vadd.f32 %v2072, %v42
    %v2105 = vadd.f32 %v2073, %v43
    %v2106 = vadd.f32 %v2074, %v44
    %v2107 = vadd.f32 %v2075, %v45
    %v2108 = vadd.f32 %v2076, %v46
    %v2109 = vadd.f32 %v2077, %v47
    %v2110 = vsel %vm85, %v2078, -inf
    %v2111 = vsel %vm85, %v2079, -inf
    %v2112 = vmax.f32 %v2110, %v2111
    %v2113 = vrot.slane %v2112, 4
    %v2114 = vmax.f32 %v2112, %v2113
    %v2115 = vrot.slane %v2114, 2
    %v2116 = vmax.f32 %v2114, %v2115
    %v2117 = vrot.slane %v2116, 1
    %v2118 = vmax.f32 %v2116, %v2117
    %v2119 = vsel %vm85, %v2080, -inf
    %v2120 = vsel %vm85, %v2081, -inf
    %v2121 = vmax.f32 %v2119, %v2120
    %v2122 = vrot.slane %v2121, 4
    %v2123 = vmax.f32 %v2121, %v2122
    %v2124 = vrot.slane %v2123, 2
    %v2125 = vmax.f32 %v2123, %v2124
    %v2126 = vrot.slane %v2125, 1
    %v2127 = vmax.f32 %v2125, %v2126
    %v2128 = vsel %vm85, %v2082, -inf
    %v2129 = vsel %vm85, %v2083, -inf
    %v2130 = vmax.f32 %v2128, %v2129
    %v2131 = vrot.slane %v2130, 4
    %v2132 = vmax.f32 %v2130, %v2131
    %v2133 = vrot.slane %v2132, 2
    %v2134 = vmax.f32 %v2132, %v2133
    %v2135 = vrot.slane %v2134, 1
    %v2136 = vmax.f32 %v2134, %v2135
    %v2137 = vsel %vm85, %v2084, -inf
    %v2138 = vsel %vm85, %v2085, -inf
    %v2139 = vmax.f32 %v2137, %v2138
    %v2140 = vrot.slane %v2139, 4
    %v2141 = vmax.f32 %v2139, %v2140
    %v2142 = vrot.slane %v2141, 2
    %v2143 = vmax.f32 %v2141, %v2142
    %v2144 = vrot.slane %v2143, 1
    %v2145 = vmax.f32 %v2143, %v2144
    %v2146 = vsel %vm85, %v2086, -inf
    %v2147 = vsel %vm85, %v2087, -inf
    %v2148 = vmax.f32 %v2146, %v2147
    %v2149 = vrot.slane %v2148, 4
    %v2150 = vmax.f32 %v2148, %v2149
    %v2151 = vrot.slane %v2150, 2
    %v2152 = vmax.f32 %v2150, %v2151
    %v2153 = vrot.slane %v2152, 1
    %v2154 = vmax.f32 %v2152, %v2153
    %v2155 = vsel %vm85, %v2088, -inf
    %v2156 = vsel %vm85, %v2089, -inf
    %v2157 = vmax.f32 %v2155, %v2156
    %v2158 = vrot.slane %v2157, 4
    %v2159 = vmax.f32 %v2157, %v2158
    %v2160 = vrot.slane %v2159, 2
    %v2161 = vmax.f32 %v2159, %v2160
    %v2162 = vrot.slane %v2161, 1
    %v2163 = vmax.f32 %v2161, %v2162
    %v2164 = vsel %vm85, %v2090, -inf
    %v2165 = vsel %vm85, %v2091, -inf
    %v2166 = vmax.f32 %v2164, %v2165
    %v2167 = vrot.slane %v2166, 4
    %v2168 = vmax.f32 %v2166, %v2167
    %v2169 = vrot.slane %v2168, 2
    %v2170 = vmax.f32 %v2168, %v2169
    %v2171 = vrot.slane %v2170, 1
    %v2172 = vmax.f32 %v2170, %v2171
    %v2173 = vsel %vm85, %v2092, -inf
    %v2174 = vsel %vm85, %v2093, -inf
    %v2175 = vmax.f32 %v2173, %v2174
    %v2176 = vrot.slane %v2175, 4
    %v2177 = vmax.f32 %v2175, %v2176
    %v2178 = vrot.slane %v2177, 2
    %v2179 = vmax.f32 %v2177, %v2178
    %v2180 = vrot.slane %v2179, 1
    %v2181 = vmax.f32 %v2179, %v2180
    %v2182 = vsel %vm85, %v2094, -inf
    %v2183 = vsel %vm85, %v2095, -inf
    %v2184 = vmax.f32 %v2182, %v2183
    %v2185 = vrot.slane %v2184, 4
    %v2186 = vmax.f32 %v2184, %v2185
    %v2187 = vrot.slane %v2186, 2
    %v2188 = vmax.f32 %v2186, %v2187
    %v2189 = vrot.slane %v2188, 1
    %v2190 = vmax.f32 %v2188, %v2189
    %v2191 = vsel %vm85, %v2096, -inf
    %v2192 = vsel %vm85, %v2097, -inf
    %v2193 = vmax.f32 %v2191, %v2192
    %v2194 = vrot.slane %v2193, 4
    %v2195 = vmax.f32 %v2193, %v2194
    %v2196 = vrot.slane %v2195, 2
    %v2197 = vmax.f32 %v2195, %v2196
    %v2198 = vrot.slane %v2197, 1
    %v2199 = vmax.f32 %v2197, %v2198
    %v2200 = vsel %vm85, %v2098, -inf
    %v2201 = vsel %vm85, %v2099, -inf
    %v2202 = vmax.f32 %v2200, %v2201
    %v2203 = vrot.slane %v2202, 4
    %v2204 = vmax.f32 %v2202, %v2203
    %v2205 = vrot.slane %v2204, 2
    %v2206 = vmax.f32 %v2204, %v2205
    %v2207 = vrot.slane %v2206, 1
    %v2208 = vmax.f32 %v2206, %v2207
    %v2209 = vsel %vm85, %v2100, -inf
    %v2210 = vsel %vm85, %v2101, -inf
    %v2211 = vmax.f32 %v2209, %v2210
    %v2212 = vrot.slane %v2211, 4
    %v2213 = vmax.f32 %v2211, %v2212
    %v2214 = vrot.slane %v2213, 2
    %v2215 = vmax.f32 %v2213, %v2214
    %v2216 = vrot.slane %v2215, 1
    %v2217 = vmax.f32 %v2215, %v2216
    %v2218 = vsel %vm85, %v2102, -inf
    %v2219 = vsel %vm85, %v2103, -inf
    %v2220 = vmax.f32 %v2218, %v2219
    %v2221 = vrot.slane %v2220, 4
    %v2222 = vmax.f32 %v2220, %v2221
    %v2223 = vrot.slane %v2222, 2
    %v2224 = vmax.f32 %v2222, %v2223
    %v2225 = vrot.slane %v2224, 1
    %v2226 = vmax.f32 %v2224, %v2225
    %v2227 = vsel %vm85, %v2104, -inf
    %v2228 = vsel %vm85, %v2105, -inf
    %v2229 = vmax.f32 %v2227, %v2228
    %v2230 = vrot.slane %v2229, 4
    %v2231 = vmax.f32 %v2229, %v2230
    %v2232 = vrot.slane %v2231, 2
    %v2233 = vmax.f32 %v2231, %v2232
    %v2234 = vrot.slane %v2233, 1
    %v2235 = vmax.f32 %v2233, %v2234
    %v2236 = vsel %vm85, %v2106, -inf
    %v2237 = vsel %vm85, %v2107, -inf
    %v2238 = vmax.f32 %v2236, %v2237
    %v2239 = vrot.slane %v2238, 4
    %v2240 = vmax.f32 %v2238, %v2239
    %v2241 = vrot.slane %v2240, 2
    %v2242 = vmax.f32 %v2240, %v2241
    %v2243 = vrot.slane %v2242, 1
    %v2244 = vmax.f32 %v2242, %v2243
    %v2245 = vsel %vm85, %v2108, -inf
    %v2246 = vsel %vm85, %v2109, -inf
    %v2247 = vmax.f32 %v2245, %v2246
    %v2248 = vrot.slane %v2247, 4
    %v2249 = vmax.f32 %v2247, %v2248
    %v2250 = vrot.slane %v2249, 2
    %v2251 = vmax.f32 %v2249, %v2250
    %v2252 = vrot.slane %v2251, 1
    %v2253 = vmax.f32 %v2251, %v2252
    %v2254 = vsub.f32 %v2078, %v2118
    %v2255 = vsub.f32 %v2079, %v2118
    %v2256 = vsub.f32 %v2080, %v2127
    %v2257 = vsub.f32 %v2081, %v2127
    %v2258 = vsub.f32 %v2082, %v2136
    %v2259 = vsub.f32 %v2083, %v2136
    %v2260 = vsub.f32 %v2084, %v2145
    %v2261 = vsub.f32 %v2085, %v2145
    %v2262 = vsub.f32 %v2086, %v2154
    %v2263 = vsub.f32 %v2087, %v2154
    %v2264 = vsub.f32 %v2088, %v2163
    %v2265 = vsub.f32 %v2089, %v2163
    %v2266 = vsub.f32 %v2090, %v2172
    %v2267 = vsub.f32 %v2091, %v2172
    %v2268 = vsub.f32 %v2092, %v2181
    %v2269 = vsub.f32 %v2093, %v2181
    %v2270 = vsub.f32 %v2094, %v2190
    %v2271 = vsub.f32 %v2095, %v2190
    %v2272 = vsub.f32 %v2096, %v2199
    %v2273 = vsub.f32 %v2097, %v2199
    %v2274 = vsub.f32 %v2098, %v2208
    %v2275 = vsub.f32 %v2099, %v2208
    %v2276 = vsub.f32 %v2100, %v2217
    %v2277 = vsub.f32 %v2101, %v2217
    %v2278 = vsub.f32 %v2102, %v2226
    %v2279 = vsub.f32 %v2103, %v2226
    %v2280 = vsub.f32 %v2104, %v2235
    %v2281 = vsub.f32 %v2105, %v2235
    %v2282 = vsub.f32 %v2106, %v2244
    %v2283 = vsub.f32 %v2107, %v2244
    %v2284 = vsub.f32 %v2108, %v2253
    %v2285 = vsub.f32 %v2109, %v2253
    %v2286 = vmul.f32 %v2254, 1.442695
    %v2287 = vpow.pop %v2286
    %v2288 = vmul.f32 %v2255, 1.442695
    %v2289 = vpow.pop %v2288
    %v2290 = vmul.f32 %v2256, 1.442695
    %v2291 = vpow.pop %v2290
    %v2292 = vmul.f32 %v2257, 1.442695
    %v2293 = vpow.pop %v2292
    %v2294 = vmul.f32 %v2258, 1.442695
    %v2295 = vpow.pop %v2294
    %v2296 = vmul.f32 %v2259, 1.442695
    %v2297 = vpow.pop %v2296
    %v2298 = vmul.f32 %v2260, 1.442695
    %v2299 = vpow.pop %v2298
    %v2300 = vmul.f32 %v2261, 1.442695
    %v2301 = vpow.pop %v2300
    %v2302 = vmul.f32 %v2262, 1.442695
    %v2303 = vpow.pop %v2302
    %v2304 = vmul.f32 %v2263, 1.442695
    %v2305 = vpow.pop %v2304
    %v2306 = vmul.f32 %v2264, 1.442695
    %v2307 = vpow.pop %v2306
    %v2308 = vmul.f32 %v2265, 1.442695
    %v2309 = vpow.pop %v2308
    %v2310 = vmul.f32 %v2266, 1.442695
    %v2311 = vpow.pop %v2310
    %v2312 = vmul.f32 %v2267, 1.442695
    %v2313 = vpow.pop %v2312
    %v2314 = vmul.f32 %v2268, 1.442695
    %v2315 = vpow.pop %v2314
    %v2316 = vmul.f32 %v2269, 1.442695
    %v2317 = vpow.pop %v2316
    %v2318 = vmul.f32 %v2270, 1.442695
    %v2319 = vpow.pop %v2318
    %v2320 = vmul.f32 %v2271, 1.442695
    %v2321 = vpow.pop %v2320
    %v2322 = vmul.f32 %v2272, 1.442695
    %v2323 = vpow.pop %v2322
    %v2324 = vmul.f32 %v2273, 1.442695
    %v2325 = vpow.pop %v2324
    %v2326 = vmul.f32 %v2274, 1.442695
    %v2327 = vpow.pop %v2326
    %v2328 = vmul.f32 %v2275, 1.442695
    %v2329 = vpow.pop %v2328
    %v2330 = vmul.f32 %v2276, 1.442695
    %v2331 = vpow.pop %v2330
    %v2332 = vmul.f32 %v2277, 1.442695
    %v2333 = vpow.pop %v2332
    %v2334 = vmul.f32 %v2278, 1.442695
    %v2335 = vpow.pop %v2334
    %v2336 = vmul.f32 %v2279, 1.442695
    %v2337 = vpow.pop %v2336
    %v2338 = vmul.f32 %v2280, 1.442695
    %v2339 = vpow.pop %v2338
    %v2340 = vmul.f32 %v2281, 1.442695
    %v2341 = vpow.pop %v2340
    %v2342 = vmul.f32 %v2282, 1.442695
    %v2343 = vpow.pop %v2342
    %v2344 = vmul.f32 %v2283, 1.442695
    %v2345 = vpow.pop %v2344
    %v2346 = vmul.f32 %v2284, 1.442695
    %v2347 = vpow.pop %v2346
    %v2348 = vmul.f32 %v2285, 1.442695
    %v2349 = vpow.pop %v2348
    %v2350 = vsel %vm85, %v2287, 0.0
    %v2351 = vsel %vm85, %v2289, 0.0
    %v2352 = vadd.f32 %v2350, %v2351
    %v2353 = vrot.slane %v2352, 4
    %v2354 = vadd.f32 %v2352, %v2353
    %v2355 = vrot.slane %v2354, 2
    %v2356 = vadd.f32 %v2354, %v2355
    %v2357 = vrot.slane %v2356, 1
    %v2358 = vadd.f32 %v2356, %v2357
    %v2359 = vsel %vm85, %v2291, 0.0
    %v2360 = vsel %vm85, %v2293, 0.0
    %v2361 = vadd.f32 %v2359, %v2360
    %v2362 = vrot.slane %v2361, 4
    %v2363 = vadd.f32 %v2361, %v2362
    %v2364 = vrot.slane %v2363, 2
    %v2365 = vadd.f32 %v2363, %v2364
    %v2366 = vrot.slane %v2365, 1
    %v2367 = vadd.f32 %v2365, %v2366
    %v2368 = vsel %vm85, %v2295, 0.0
    %v2369 = vsel %vm85, %v2297, 0.0
    %v2370 = vadd.f32 %v2368, %v2369
    %v2371 = vrot.slane %v2370, 4
    %v2372 = vadd.f32 %v2370, %v2371
    %v2373 = vrot.slane %v2372, 2
    %v2374 = vadd.f32 %v2372, %v2373
    %v2375 = vrot.slane %v2374, 1
    %v2376 = vadd.f32 %v2374, %v2375
    %v2377 = vsel %vm85, %v2299, 0.0
    %v2378 = vsel %vm85, %v2301, 0.0
    %v2379 = vadd.f32 %v2377, %v2378
    %v2380 = vrot.slane %v2379, 4
    %v2381 = vadd.f32 %v2379, %v2380
    %v2382 = vrot.slane %v2381, 2
    %v2383 = vadd.f32 %v2381, %v2382
    %v2384 = vrot.slane %v2383, 1
    %v2385 = vadd.f32 %v2383, %v2384
    %v2386 = vsel %vm85, %v2303, 0.0
    %v2387 = vsel %vm85, %v2305, 0.0
    %v2388 = vadd.f32 %v2386, %v2387
    %v2389 = vrot.slane %v2388, 4
    %v2390 = vadd.f32 %v2388, %v2389
    %v2391 = vrot.slane %v2390, 2
    %v2392 = vadd.f32 %v2390, %v2391
    %v2393 = vrot.slane %v2392, 1
    %v2394 = vadd.f32 %v2392, %v2393
    %v2395 = vsel %vm85, %v2307, 0.0
    %v2396 = vsel %vm85, %v2309, 0.0
    %v2397 = vadd.f32 %v2395, %v2396
    %v2398 = vrot.slane %v2397, 4
    %v2399 = vadd.f32 %v2397, %v2398
    %v2400 = vrot.slane %v2399, 2
    %v2401 = vadd.f32 %v2399, %v2400
    %v2402 = vrot.slane %v2401, 1
    %v2403 = vadd.f32 %v2401, %v2402
    %v2404 = vsel %vm85, %v2311, 0.0
    %v2405 = vsel %vm85, %v2313, 0.0
    %v2406 = vadd.f32 %v2404, %v2405
    %v2407 = vrot.slane %v2406, 4
    %v2408 = vadd.f32 %v2406, %v2407
    %v2409 = vrot.slane %v2408, 2
    %v2410 = vadd.f32 %v2408, %v2409
    %v2411 = vrot.slane %v2410, 1
    %v2412 = vadd.f32 %v2410, %v2411
    %v2413 = vsel %vm85, %v2315, 0.0
    %v2414 = vsel %vm85, %v2317, 0.0
    %v2415 = vadd.f32 %v2413, %v2414
    %v2416 = vrot.slane %v2415, 4
    %v2417 = vadd.f32 %v2415, %v2416
    %v2418 = vrot.slane %v2417, 2
    %v2419 = vadd.f32 %v2417, %v2418
    %v2420 = vrot.slane %v2419, 1
    %v2421 = vadd.f32 %v2419, %v2420
    %v2422 = vsel %vm85, %v2319, 0.0
    %v2423 = vsel %vm85, %v2321, 0.0
    %v2424 = vadd.f32 %v2422, %v2423
    %v2425 = vrot.slane %v2424, 4
    %v2426 = vadd.f32 %v2424, %v2425
    %v2427 = vrot.slane %v2426, 2
    %v2428 = vadd.f32 %v2426, %v2427
    %v2429 = vrot.slane %v2428, 1
    %v2430 = vadd.f32 %v2428, %v2429
    %v2431 = vsel %vm85, %v2323, 0.0
    %v2432 = vsel %vm85, %v2325, 0.0
    %v2433 = vadd.f32 %v2431, %v2432
    %v2434 = vrot.slane %v2433, 4
    %v2435 = vadd.f32 %v2433, %v2434
    %v2436 = vrot.slane %v2435, 2
    %v2437 = vadd.f32 %v2435, %v2436
    %v2438 = vrot.slane %v2437, 1
    %v2439 = vadd.f32 %v2437, %v2438
    %v2440 = vsel %vm85, %v2327, 0.0
    %v2441 = vsel %vm85, %v2329, 0.0
    %v2442 = vadd.f32 %v2440, %v2441
    %v2443 = vrot.slane %v2442, 4
    %v2444 = vadd.f32 %v2442, %v2443
    %v2445 = vrot.slane %v2444, 2
    %v2446 = vadd.f32 %v2444, %v2445
    %v2447 = vrot.slane %v2446, 1
    %v2448 = vadd.f32 %v2446, %v2447
    %v2449 = vsel %vm85, %v2331, 0.0
    %v2450 = vsel %vm85, %v2333, 0.0
    %v2451 = vadd.f32 %v2449, %v2450
    %v2452 = vrot.slane %v2451, 4
    %v2453 = vadd.f32 %v2451, %v2452
    %v2454 = vrot.slane %v2453, 2
    %v2455 = vadd.f32 %v2453, %v2454
    %v2456 = vrot.slane %v2455, 1
    %v2457 = vadd.f32 %v2455, %v2456
    %v2458 = vsel %vm85, %v2335, 0.0
    %v2459 = vsel %vm85, %v2337, 0.0
    %v2460 = vadd.f32 %v2458, %v2459
    %v2461 = vrot.slane %v2460, 4
    %v2462 = vadd.f32 %v2460, %v2461
    %v2463 = vrot.slane %v2462, 2
    %v2464 = vadd.f32 %v2462, %v2463
    %v2465 = vrot.slane %v2464, 1
    %v2466 = vadd.f32 %v2464, %v2465
    %v2467 = vsel %vm85, %v2339, 0.0
    %v2468 = vsel %vm85, %v2341, 0.0
    %v2469 = vadd.f32 %v2467, %v2468
    %v2470 = vrot.slane %v2469, 4
    %v2471 = vadd.f32 %v2469, %v2470
    %v2472 = vrot.slane %v2471, 2
    %v2473 = vadd.f32 %v2471, %v2472
    %v2474 = vrot.slane %v2473, 1
    %v2475 = vadd.f32 %v2473, %v2474
    %v2476 = vsel %vm85, %v2343, 0.0
    %v2477 = vsel %vm85, %v2345, 0.0
    %v2478 = vadd.f32 %v2476, %v2477
    %v2479 = vrot.slane %v2478, 4
    %v2480 = vadd.f32 %v2478, %v2479
    %v2481 = vrot.slane %v2480, 2
    %v2482 = vadd.f32 %v2480, %v2481
    %v2483 = vrot.slane %v2482, 1
    %v2484 = vadd.f32 %v2482, %v2483
    %v2485 = vsel %vm85, %v2347, 0.0
    %v2486 = vsel %vm85, %v2349, 0.0
    %v2487 = vadd.f32 %v2485, %v2486
    %v2488 = vrot.slane %v2487, 4
    %v2489 = vadd.f32 %v2487, %v2488
    %v2490 = vrot.slane %v2489, 2
    %v2491 = vadd.f32 %v2489, %v2490
    %v2492 = vrot.slane %v2491, 1
    %v2493 = vadd.f32 %v2491, %v2492
    %v2494 = vrcp.pop %v2358
    %v2495 = vmul.f32 %v2287, %v2494
    %v2496 = vmul.f32 %v2289, %v2494
    %v2497 = vrcp.pop %v2367
    %v2498 = vmul.f32 %v2291, %v2497
    %v2499 = vmul.f32 %v2293, %v2497
    %v2500 = vrcp.pop %v2376
    %v2501 = vmul.f32 %v2295, %v2500
    %v2502 = vmul.f32 %v2297, %v2500
    %v2503 = vrcp.pop %v2385
    %v2504 = vmul.f32 %v2299, %v2503
    %v2505 = vmul.f32 %v2301, %v2503
    %v2506 = vrcp.pop %v2394
    %v2507 = vmul.f32 %v2303, %v2506
    %v2508 = vmul.f32 %v2305, %v2506
    %v2509 = vrcp.pop %v2403
    %v2510 = vmul.f32 %v2307, %v2509
    %v2511 = vmul.f32 %v2309, %v2509
    %v2512 = vrcp.pop %v2412
    %v2513 = vmul.f32 %v2311, %v2512
    %v2514 = vmul.f32 %v2313, %v2512
    %v2515 = vrcp.pop %v2421
    %v2516 = vmul.f32 %v2315, %v2515
    %v2517 = vmul.f32 %v2317, %v2515
    %v2518 = vrcp.pop %v2430
    %v2519 = vmul.f32 %v2319, %v2518
    %v2520 = vmul.f32 %v2321, %v2518
    %v2521 = vrcp.pop %v2439
    %v2522 = vmul.f32 %v2323, %v2521
    %v2523 = vmul.f32 %v2325, %v2521
    %v2524 = vrcp.pop %v2448
    %v2525 = vmul.f32 %v2327, %v2524
    %v2526 = vmul.f32 %v2329, %v2524
    %v2527 = vrcp.pop %v2457
    %v2528 = vmul.f32 %v2331, %v2527
    %v2529 = vmul.f32 %v2333, %v2527
    %v2530 = vrcp.pop %v2466
    %v2531 = vmul.f32 %v2335, %v2530
    %v2532 = vmul.f32 %v2337, %v2530
    %v2533 = vrcp.pop %v2475
    %v2534 = vmul.f32 %v2339, %v2533
    %v2535 = vmul.f32 %v2341, %v2533
    %v2536 = vrcp.pop %v2484
    %v2537 = vmul.f32 %v2343, %v2536
    %v2538 = vmul.f32 %v2345, %v2536
    %v2539 = vrcp.pop %v2493
    %v2540 = vmul.f32 %v2347, %v2539
    %v2541 = vmul.f32 %v2349, %v2539
    %v2542 = vadd.f32 %v243, %v1088
    %v2543 = vadd.f32 %v248, %v1089
    %v2544 = vadd.f32 %v243, %v1090
    %v2545 = vadd.f32 %v248, %v1091
    %v2546 = vadd.f32 %v243, %v1092
    %v2547 = vadd.f32 %v248, %v1093
    %v2548 = vadd.f32 %v243, %v1094
    %v2549 = vadd.f32 %v248, %v1095
    %v2550 = vadd.f32 %v243, %v1096
    %v2551 = vadd.f32 %v248, %v1097
    %v2552 = vadd.f32 %v243, %v1098
    %v2553 = vadd.f32 %v248, %v1099
    %v2554 = vadd.f32 %v243, %v1100
    %v2555 = vadd.f32 %v248, %v1101
    %v2556 = vadd.f32 %v243, %v1102
    %v2557 = vadd.f32 %v248, %v1103
    %v2558 = vadd.f32 %v243, %v1104
    %v2559 = vadd.f32 %v248, %v1105
    %v2560 = vadd.f32 %v243, %v1106
    %v2561 = vadd.f32 %v248, %v1107
    %v2562 = vadd.f32 %v243, %v1108
    %v2563 = vadd.f32 %v248, %v1109
    %v2564 = vadd.f32 %v243, %v1110
    %v2565 = vadd.f32 %v248, %v1111
    %v2566 = vadd.f32 %v243, %v1112
    %v2567 = vadd.f32 %v248, %v1113
    %v2568 = vadd.f32 %v243, %v1114
    %v2569 = vadd.f32 %v248, %v1115
    %v2570 = vadd.f32 %v243, %v1116
    %v2571 = vadd.f32 %v248, %v1117
    %v2572 = vadd.f32 %v243, %v1118
    %v2573 = vadd.f32 %v248, %v1119
    %v2574 = vmul.f32 %v2495, %v2542
    %v2575 = vmul.f32 %v2496, %v2543
    %v2576 = vmul.f32 %v2498, %v2544
    %v2577 = vmul.f32 %v2499, %v2545
    %v2578 = vmul.f32 %v2501, %v2546
    %v2579 = vmul.f32 %v2502, %v2547
    %v2580 = vmul.f32 %v2504, %v2548
    %v2581 = vmul.f32 %v2505, %v2549
    %v2582 = vmul.f32 %v2507, %v2550
    %v2583 = vmul.f32 %v2508, %v2551
    %v2584 = vmul.f32 %v2510, %v2552
    %v2585 = vmul.f32 %v2511, %v2553
    %v2586 = vmul.f32 %v2513, %v2554
    %v2587 = vmul.f32 %v2514, %v2555
    %v2588 = vmul.f32 %v2516, %v2556
    %v2589 = vmul.f32 %v2517, %v2557
    %v2590 = vmul.f32 %v2519, %v2558
    %v2591 = vmul.f32 %v2520, %v2559
    %v2592 = vmul.f32 %v2522, %v2560
    %v2593 = vmul.f32 %v2523, %v2561
    %v2594 = vmul.f32 %v2525, %v2562
    %v2595 = vmul.f32 %v2526, %v2563
    %v2596 = vmul.f32 %v2528, %v2564
    %v2597 = vmul.f32 %v2529, %v2565
    %v2598 = vmul.f32 %v2531, %v2566
    %v2599 = vmul.f32 %v2532, %v2567
    %v2600 = vmul.f32 %v2534, %v2568
    %v2601 = vmul.f32 %v2535, %v2569
    %v2602 = vmul.f32 %v2537, %v2570
    %v2603 = vmul.f32 %v2538, %v2571
    %v2604 = vmul.f32 %v2540, %v2572
    %v2605 = vmul.f32 %v2541, %v2573
    %v2606 = vsel %vm85, %v2574, 0.0
    %v2607 = vsel %vm85, %v2575, 0.0
    %v2608 = vadd.f32 %v2606, %v2607
    %v2609 = vrot.slane %v2608, 4
    %v2610 = vadd.f32 %v2608, %v2609
    %v2611 = vrot.slane %v2610, 2
    %v2612 = vadd.f32 %v2610, %v2611
    %v2613 = vrot.slane %v2612, 1
    %v2614 = vadd.f32 %v2612, %v2613
    %v2615 = vsel %vm85, %v2576, 0.0
    %v2616 = vsel %vm85, %v2577, 0.0
    %v2617 = vadd.f32 %v2615, %v2616
    %v2618 = vrot.slane %v2617, 4
    %v2619 = vadd.f32 %v2617, %v2618
    %v2620 = vrot.slane %v2619, 2
    %v2621 = vadd.f32 %v2619, %v2620
    %v2622 = vrot.slane %v2621, 1
    %v2623 = vadd.f32 %v2621, %v2622
    %v2624 = vsel %vm85, %v2578, 0.0
    %v2625 = vsel %vm85, %v2579, 0.0
    %v2626 = vadd.f32 %v2624, %v2625
    %v2627 = vrot.slane %v2626, 4
    %v2628 = vadd.f32 %v2626, %v2627
    %v2629 = vrot.slane %v2628, 2
    %v2630 = vadd.f32 %v2628, %v2629
    %v2631 = vrot.slane %v2630, 1
    %v2632 = vadd.f32 %v2630, %v2631
    %v2633 = vsel %vm85, %v2580, 0.0
    %v2634 = vsel %vm85, %v2581, 0.0
    %v2635 = vadd.f32 %v2633, %v2634
    %v2636 = vrot.slane %v2635, 4
    %v2637 = vadd.f32 %v2635, %v2636
    %v2638 = vrot.slane %v2637, 2
    %v2639 = vadd.f32 %v2637, %v2638
    %v2640 = vrot.slane %v2639, 1
    %v2641 = vadd.f32 %v2639, %v2640
    %v2642 = vsel %vm85, %v2582, 0.0
    %v2643 = vsel %vm85, %v2583, 0.0
    %v2644 = vadd.f32 %v2642, %v2643
    %v2645 = vrot.slane %v2644, 4
    %v2646 = vadd.f32 %v2644, %v2645
    %v2647 = vrot.slane %v2646, 2
    %v2648 = vadd.f32 %v2646, %v2647
    %v2649 = vrot.slane %v2648, 1
    %v2650 = vadd.f32 %v2648, %v2649
    %v2651 = vsel %vm85, %v2584, 0.0
    %v2652 = vsel %vm85, %v2585, 0.0
    %v2653 = vadd.f32 %v2651, %v2652
    %v2654 = vrot.slane %v2653, 4
    %v2655 = vadd.f32 %v2653, %v2654
    %v2656 = vrot.slane %v2655, 2
    %v2657 = vadd.f32 %v2655, %v2656
    %v2658 = vrot.slane %v2657, 1
    %v2659 = vadd.f32 %v2657, %v2658
    %v2660 = vsel %vm85, %v2586, 0.0
    %v2661 = vsel %vm85, %v2587, 0.0
    %v2662 = vadd.f32 %v2660, %v2661
    %v2663 = vrot.slane %v2662, 4
    %v2664 = vadd.f32 %v2662, %v2663
    %v2665 = vrot.slane %v2664, 2
    %v2666 = vadd.f32 %v2664, %v2665
    %v2667 = vrot.slane %v2666, 1
    %v2668 = vadd.f32 %v2666, %v2667
    %v2669 = vsel %vm85, %v2588, 0.0
    %v2670 = vsel %vm85, %v2589, 0.0
    %v2671 = vadd.f32 %v2669, %v2670
    %v2672 = vrot.slane %v2671, 4
    %v2673 = vadd.f32 %v2671, %v2672
    %v2674 = vrot.slane %v2673, 2
    %v2675 = vadd.f32 %v2673, %v2674
    %v2676 = vrot.slane %v2675, 1
    %v2677 = vadd.f32 %v2675, %v2676
    %v2678 = vsel %vm85, %v2590, 0.0
    %v2679 = vsel %vm85, %v2591, 0.0
    %v2680 = vadd.f32 %v2678, %v2679
    %v2681 = vrot.slane %v2680, 4
    %v2682 = vadd.f32 %v2680, %v2681
    %v2683 = vrot.slane %v2682, 2
    %v2684 = vadd.f32 %v2682, %v2683
    %v2685 = vrot.slane %v2684, 1
    %v2686 = vadd.f32 %v2684, %v2685
    %v2687 = vsel %vm85, %v2592, 0.0
    %v2688 = vsel %vm85, %v2593, 0.0
    %v2689 = vadd.f32 %v2687, %v2688
    %v2690 = vrot.slane %v2689, 4
    %v2691 = vadd.f32 %v2689, %v2690
    %v2692 = vrot.slane %v2691, 2
    %v2693 = vadd.f32 %v2691, %v2692
    %v2694 = vrot.slane %v2693, 1
    %v2695 = vadd.f32 %v2693, %v2694
    %v2696 = vsel %vm85, %v2594, 0.0
    %v2697 = vsel %vm85, %v2595, 0.0
    %v2698 = vadd.f32 %v2696, %v2697
    %v2699 = vrot.slane %v2698, 4
    %v2700 = vadd.f32 %v2698, %v2699
    %v2701 = vrot.slane %v2700, 2
    %v2702 = vadd.f32 %v2700, %v2701
    %v2703 = vrot.slane %v2702, 1
    %v2704 = vadd.f32 %v2702, %v2703
    %v2705 = vsel %vm85, %v2596, 0.0
    %v2706 = vsel %vm85, %v2597, 0.0
    %v2707 = vadd.f32 %v2705, %v2706
    %v2708 = vrot.slane %v2707, 4
    %v2709 = vadd.f32 %v2707, %v2708
    %v2710 = vrot.slane %v2709, 2
    %v2711 = vadd.f32 %v2709, %v2710
    %v2712 = vrot.slane %v2711, 1
    %v2713 = vadd.f32 %v2711, %v2712
    %v2714 = vsel %vm85, %v2598, 0.0
    %v2715 = vsel %vm85, %v2599, 0.0
    %v2716 = vadd.f32 %v2714, %v2715
    %v2717 = vrot.slane %v2716, 4
    %v2718 = vadd.f32 %v2716, %v2717
    %v2719 = vrot.slane %v2718, 2
    %v2720 = vadd.f32 %v2718, %v2719
    %v2721 = vrot.slane %v2720, 1
    %v2722 = vadd.f32 %v2720, %v2721
    %v2723 = vsel %vm85, %v2600, 0.0
    %v2724 = vsel %vm85, %v2601, 0.0
    %v2725 = vadd.f32 %v2723, %v2724
    %v2726 = vrot.slane %v2725, 4
    %v2727 = vadd.f32 %v2725, %v2726
    %v2728 = vrot.slane %v2727, 2
    %v2729 = vadd.f32 %v2727, %v2728
    %v2730 = vrot.slane %v2729, 1
    %v2731 = vadd.f32 %v2729, %v2730
    %v2732 = vsel %vm85, %v2602, 0.0
    %v2733 = vsel %vm85, %v2603, 0.0
    %v2734 = vadd.f32 %v2732, %v2733
    %v2735 = vrot.slane %v2734, 4
    %v2736 = vadd.f32 %v2734, %v2735
    %v2737 = vrot.slane %v2736, 2
    %v2738 = vadd.f32 %v2736, %v2737
    %v2739 = vrot.slane %v2738, 1
    %v2740 = vadd.f32 %v2738, %v2739
    %v2741 = vsel %vm85, %v2604, 0.0
    %v2742 = vsel %vm85, %v2605, 0.0
    %v2743 = vadd.f32 %v2741, %v2742
    %v2744 = vrot.slane %v2743, 4
    %v2745 = vadd.f32 %v2743, %v2744
    %v2746 = vrot.slane %v2745, 2
    %v2747 = vadd.f32 %v2745, %v2746
    %v2748 = vrot.slane %v2747, 1
    %v2749 = vadd.f32 %v2747, %v2748
    %v2750 = vlaneseq
    %v2751 = vshrl.u32 %v2750, 7
    %v2752 = vsub.s32 0, %v2751
    %v2753 = vrot.slane %v80, %v2752
    %vm2770 = vcmask 1041409
    %v2771 = vsel %vm2770, %v2623, %v2614
    %vm2772 = vcmask 1042434
    %v2773 = vsel %vm2772, %v2632, %v2771
    %vm2774 = vcmask 1043459
    %v2775 = vsel %vm2774, %v2641, %v2773
    %vm2776 = vcmask 1044484
    %v2777 = vsel %vm2776, %v2650, %v2775
    %vm2778 = vcmask 1045509
    %v2779 = vsel %vm2778, %v2659, %v2777
    %vm2780 = vcmask 1046534
    %v2781 = vsel %vm2780, %v2668, %v2779
    %vm2782 = vcmask 1047559
    %v2783 = vsel %vm2782, %v2677, %v2781
    %v2784 = vsel %vm2770, %v2695, %v2686
    %v2785 = vsel %vm2772, %v2704, %v2784
    %v2786 = vsel %vm2774, %v2713, %v2785
    %v2787 = vsel %vm2776, %v2722, %v2786
    %v2788 = vsel %vm2778, %v2731, %v2787
    %v2789 = vsel %vm2780, %v2740, %v2788
    %v2790 = vsel %vm2782, %v2749, %v2789
    %v2791 = vsel %vm85, %v2783, 0
    %v2793 = vsel %vm85, %v2790, 0
    %2795 = vmatprep.subr.mxu0 0.0
    %2796 = vmatpush1.msra.mxu0 %v78
    %2797 = vmatprep.subr.mxu0 0.0
    %2798 = vmatpush1.msra.mxu0 %v79
    %2799 = vmatprep.subr.mxu0 0.0
    %2800 = vmatpush1.msra.mxu0 0.0
    %2801 = vmatprep.subr.mxu0 0.0
    %2802 = vmatpush1.msra.mxu0 0.0
    %2803 = vmatprep.subr.mxu0 0.0
    %2804 = vmatpush1.msra.mxu0 0.0
    %2805 = vmatprep.subr.mxu0 0.0
    %2806 = vmatpush1.msra.mxu0 0.0
    %2807 = vmatprep.subr.mxu0 0.0
    %2808 = vmatpush1.msra.mxu0 0.0
    %2809 = vmatprep.subr.mxu0 0.0
    %2810 = vmatpush1.msra.mxu0 0.0
    %2811 = vmatprep.subr.mxu0 0.0
    %2812 = vmatpush1.msra.mxu0 0.0
    %2813 = vmatprep.subr.mxu0 0.0
    %2814 = vmatpush1.msra.mxu0 0.0
    %2815 = vmatprep.subr.mxu0 0.0
    %2816 = vmatpush1.msra.mxu0 0.0
    %2817 = vmatprep.subr.mxu0 0.0
    %2818 = vmatpush1.msra.mxu0 0.0
    %2819 = vmatprep.subr.mxu0 0.0
    %2820 = vmatpush1.msra.mxu0 0.0
    %2821 = vmatprep.subr.mxu0 0.0
    %2822 = vmatpush1.msra.mxu0 0.0
    %2823 = vmatprep.subr.mxu0 0.0
    %2824 = vmatpush1.msra.mxu0 0.0
    %2825 = vmatprep.subr.mxu0 0.0
    %2826 = vmatpush1.msra.mxu0 0.0
    %2827 = vmatprep.subr.mxu0 0.0
    %2828 = vmatpush1.msra.mxu0 0.0
    %2829 = vmatprep.subr.mxu0 0.0
    %2830 = vmatpush1.msra.mxu0 0.0
    %2831 = vmatprep.subr.mxu0 0.0
    %2832 = vmatpush1.msra.mxu0 0.0
    %2833 = vmatprep.subr.mxu0 0.0
    %2834 = vmatpush1.msra.mxu0 0.0
    %2835 = vmatprep.subr.mxu0 0.0
    %2836 = vmatpush1.msra.mxu0 0.0
    %2837 = vmatprep.subr.mxu0 0.0
    %2838 = vmatpush1.msra.mxu0 0.0
    %2839 = vmatprep.subr.mxu0 0.0
    %2840 = vmatpush1.msra.mxu0 0.0
    %2841 = vmatprep.subr.mxu0 0.0
    %2842 = vmatpush1.msra.mxu0 0.0
    %2843 = vmatprep.subr.mxu0 0.0
    %2844 = vmatpush1.msra.mxu0 0.0
    %2845 = vmatprep.subr.mxu0 0.0
    %2846 = vmatpush1.msra.mxu0 0.0
    %2847 = vmatprep.subr.mxu0 0.0
    %2848 = vmatpush1.msra.mxu0 0.0
    %2849 = vmatprep.subr.mxu0 0.0
    %2850 = vmatpush1.msra.mxu0 0.0
    %2851 = vmatprep.subr.mxu0 0.0
    %2852 = vmatpush1.msra.mxu0 0.0
    %2853 = vmatprep.subr.mxu0 0.0
    %2854 = vmatpush1.msra.mxu0 0.0
    %2855 = vmatprep.subr.mxu0 0.0
    %2856 = vmatpush1.msra.mxu0 0.0
    %2857 = vmatprep.subr.mxu0 0.0
    %2858 = vmatpush1.msra.mxu0 0.0
    %2859 = vmatprep.mubr.f32.mxu0 0.0
    %2860 = vmatmul.mubr.f32.gmra.mrb[0].mxu0 %v2791
    %v2861 = vpop.f32.mrb[0].mxu0
    %v2862 = vadd.f32 %v2753, %v2861
    %v2863 = vpop.f32.mrb[0].mxu0
    %2864 = vmatprep.mubr.f32.mxu0 0.0
    %2865 = vmatmul.mubr.f32.gmra.mrb[0].mxu0 %v2793
    %v2866 = vpop.f32.mrb[0].mxu0
    %v2867 = vadd.f32 %v2753, %v2866
    %v2868 = vpop.f32.mrb[0].mxu0
    %2869 = vdwg.mxu0
    %v2870 = vmax.f32 %v2862, 0.0
    %v2871 = vmax.f32 %v2867, 0.0
    %2872 = vst.msk [vmem:[#allocation2] sm:$0xff] %vm85, %v2870
    %2873 = vst.msk [vmem:[#allocation2 + $0x8] sm:$0xff] %vm85, %v2871
    // Predicated region
    $region10: #{transformer_block.1} parent=1 // pred_check
      _
    $region11: #{transformer_block.1} parent=1 // pred_check_branch
      %2875 = sbr.rel (0) target = $region13
    $region12: #{transformer_block.1} parent=1 // pred_region
      %s2877 = ssub.s32 256, 256
      %2878 = vsyncadd [#allocation3], %s2877
      %s2879 = sshll.u32 [#allocation2], 4
      %s2880 = int_to_ptr.vmem [resolvable:$true] %s2879
      %2885 = dma.vmem_to_hbm [thread:$0]  %s2880, 256, %s2, [#allocation3], 128, 128, 8
    $region13: #{transformer_block.1} parent=1 // pred_fallthru
      _
    // Predicated region
    $region14: #{transformer_block.1} parent=1 // pred_check
      _
    $region15: #{transformer_block.1} parent=1 // pred_check_branch
      %2887 = sbr.rel (0) target = $region17
    $region16: #{transformer_block.1} parent=1 // pred_region
      %2888 = dma.done [#allocation3], 256
    $region17: #{transformer_block.1} parent=1 // pred_fallthru
      _
    %2889 = vsyncpa [#allocation3], 1

</llo_original>
